<compile_context>
chip_gen: v6e
topology: v6e:2x2x1
jax: 0.10.0
libtpu: 0.0.40
codegen_flags: <defaults>
</compile_context>

<pallas_src>
import functools

import jax
import jax.numpy as jnp
from jax.experimental import pallas as pl
from jax.experimental.pallas import tpu as pltpu


def _compl_mul_kernel(ar_ref, ai_ref, wr_ref, wi_ref, or_ref, oi_ref, *, B, Cin):
    """One (corner, M-tile) block of the complex channel contraction.

    ar/ai : (Cin, B,    TM)  real / imag activations
    wr/wi : (Cin, Cout, TM)  real / imag weights
    or/oi : (B,   Cout, TM)  real / imag outputs
    """
    cout_tm = or_ref.shape[1:]  # (Cout, TM)

    # B / Cin are small and static -> Python unroll is exact and cheap, and
    # keeps only one (Cout, TM) accumulator pair live at a time.
    # TODO(synk): for large Cin/B switch to lax.fori_loop(..., unroll=4-8)
    # with pl.ds slicing so unrolled code size / live ranges stay bounded.
    for b in range(B):
        acc_r = jnp.zeros(cout_tm, jnp.float32)
        acc_i = jnp.zeros(cout_tm, jnp.float32)
        for i in range(Cin):
            a_r = ar_ref[i, b:b + 1, :]        # (1, TM) -> broadcast over Cout
            a_i = ai_ref[i, b:b + 1, :]
            w_r = wr_ref[i]                    # (Cout, TM), aligned leading-axis view
            w_i = wi_ref[i]
            acc_r = acc_r + (a_r * w_r - a_i * w_i)
            acc_i = acc_i + (a_r * w_i + a_i * w_r)
        or_ref[b] = acc_r
        oi_ref[b] = acc_i


def _pick_tile(M, B, Cin, Cout):
    """Pick the mode tile TM and the padded (lane-dense) mode count Mp."""
    pad8 = lambda n: -(-n // 8) * 8
    # Sublane-padded rows moved per grid step (2 act + 2 weight + 2 out planes).
    rows = 2 * Cin * pad8(B) + 2 * Cin * pad8(Cout) + 2 * B * pad8(Cout)
    mp128 = -(-M // 128) * 128
    tm = min(512, mp128)                      # 512-wide tiles ~ near DMA roofline
    while tm > 128 and rows * tm * 4 * 2 > 12 * 1024 * 1024:
        tm //= 2                              # keep double-buffered set small (v7x: 64 MiB VMEM)
    mp = -(-mp128 // tm) * tm
    return mp, tm


def _compl_mul_corners(ar, ai, wr, wi, tm):
    """ar/ai: (4,Cin,B,Mp), wr/wi: (4,Cin,Cout,Mp) -> 2x (4,B,Cout,Mp) f32."""
    _, Cin, B, mp = ar.shape
    Cout = wr.shape[2]
    n_m_tiles = mp // tm

    pad8 = lambda n: -(-n // 8) * 8
    step_bytes = (2 * Cin * pad8(B) + 2 * Cin * pad8(Cout) + 2 * B * pad8(Cout)) * tm * 4
    vmem_limit = int(min(56 * 1024 * 1024, max(32 * 1024 * 1024, 4 * step_bytes)))

    act_spec = pl.BlockSpec((None, Cin, B, tm), lambda c, t: (c, 0, 0, t))
    w_spec = pl.BlockSpec((None, Cin, Cout, tm), lambda c, t: (c, 0, 0, t))
    out_spec = pl.BlockSpec((None, B, Cout, tm), lambda c, t: (c, 0, 0, t))

    grid_spec = pltpu.PrefetchScalarGridSpec(
        num_scalar_prefetch=0,
        grid=(4, n_m_tiles),                  # (corner, M tile) -- fully independent
        in_specs=[act_spec, act_spec, w_spec, w_spec],
        out_specs=[out_spec, out_spec],
    )
    out_shape = (
        jax.ShapeDtypeStruct((4, B, Cout, mp), jnp.float32),
        jax.ShapeDtypeStruct((4, B, Cout, mp), jnp.float32),
    )
    kernel = functools.partial(_compl_mul_kernel, B=B, Cin=Cin)
    return pl.pallas_call(
        kernel,
        grid_spec=grid_spec,
        out_shape=out_shape,
        compiler_params=pltpu.CompilerParams(
            dimension_semantics=("parallel", "parallel"),
            vmem_limit_bytes=vmem_limit),
    )(ar, ai, wr, wi)


@functools.partial(jax.jit, static_argnums=(5, 6, 7))
def spectral_conv3d(x, w1, w2, w3, w4, modes1, modes2, modes3):
    """Forward pass of SpectralConv3d.  x: (B, Cin, X, Y, Z) float32."""
    B, Cin, X, Y, Z = x.shape
    Cout = w1.shape[1]
    m1, m2, m3 = modes1, modes2, modes3
    M = m1 * m2 * m3

    # FFT glue (no Pallas equivalent).
    x_ft = jnp.fft.rfftn(x, axes=(2, 3, 4))            # (B,Cin,X,Y,Z//2+1) c64
    z_dim = min(x_ft.shape[4], m3)

    def corner(sl_x, sl_y):
        c = x_ft[:, :, sl_x, sl_y, :z_dim]              # (B,Cin,m1,m2,z_dim)
        if z_dim < m3:                                  # zero-pad like the torch coeff buffer
            c = jnp.pad(c, [(0, 0)] * 4 + [(0, m3 - z_dim)])
        return c

    corners = jnp.stack(
        [
            corner(slice(0, m1), slice(0, m2)),
            corner(slice(X - m1, X), slice(0, m2)),
            corner(slice(0, m1), slice(Y - m2, Y)),
            corner(slice(X - m1, X), slice(Y - m2, Y)),
        ],
        axis=0,
    )                                                   # (4,B,Cin,m1,m2,m3) c64
    weights = jnp.stack([w1, w2, w3, w4], axis=0)       # (4,Cin,Cout,m1,m2,m3) c64

    mp, tm = _pick_tile(M, B, Cin, Cout)

    # Activations -> (4, Cin, B, Mp) with the lane-dense mode axis last.
    a = jnp.transpose(corners, (0, 2, 1, 3, 4, 5)).reshape(4, Cin, B, M)
    a = jnp.pad(a, ((0, 0), (0, 0), (0, 0), (0, mp - M)))
    ar = jnp.real(a).astype(jnp.float32)
    ai = jnp.imag(a).astype(jnp.float32)

    # Weights -> (4, Cin, Cout, Mp).
    w = weights.reshape(4, Cin, Cout, M)
    w = jnp.pad(w, ((0, 0), (0, 0), (0, 0), (0, mp - M)))
    wr = jnp.real(w).astype(jnp.float32)
    wi = jnp.imag(w).astype(jnp.float32)

    out_r, out_i = _compl_mul_corners(ar, ai, wr, wi, tm)

    out = (out_r[..., :M] + 1j * out_i[..., :M]).astype(jnp.complex64)
    out = out.reshape(4, B, Cout, m1, m2, m3)

    out_ft = jnp.zeros((B, Cout, X, Y, m3), jnp.complex64)
    out_ft = out_ft.at[:, :, :m1, :m2, :].set(out[0])
    out_ft = out_ft.at[:, :, X - m1:, :m2, :].set(out[1])
    out_ft = out_ft.at[:, :, :m1, Y - m2:, :].set(out[2])
    out_ft = out_ft.at[:, :, X - m1:, Y - m2:, :].set(out[3])

    # Inverse FFT back to (B, Cout, X, Y, Z).
    return jnp.fft.irfftn(out_ft, s=(X, Y, Z), axes=(2, 3, 4))


def _reference_spectral_conv3d(x, w1, w2, w3, w4, m1, m2, m3):
    """Pure-JAX mirror of the PyTorch forward (full f32/c64 precision)."""
    B, Cin, X, Y, Z = x.shape
    Cout = w1.shape[1]
    x_ft = jnp.fft.rfftn(x, axes=(2, 3, 4))
    z_dim = min(x_ft.shape[4], m3)

    def mul(a, w):
        # einsum('bixyz,ioxyz->boxyz') without MXU/default-precision surprises.
        return jnp.sum(a[:, :, None] * w[None], axis=1)

    def coeff(sl_x, sl_y):
        c = jnp.zeros((B, Cin, m1, m2, m3), jnp.complex64)
        return c.at[..., :z_dim].set(x_ft[:, :, sl_x, sl_y, :z_dim])

    out_ft = jnp.zeros((B, Cout, X, Y, m3), jnp.complex64)
    out_ft = out_ft.at[:, :, :m1, :m2, :].set(mul(coeff(slice(0, m1), slice(0, m2)), w1))
    out_ft = out_ft.at[:, :, X - m1:, :m2, :].set(mul(coeff(slice(X - m1, X), slice(0, m2)), w2))
    out_ft = out_ft.at[:, :, :m1, Y - m2:, :].set(mul(coeff(slice(0, m1), slice(Y - m2, Y)), w3))
    out_ft = out_ft.at[:, :, X - m1:, Y - m2:, :].set(mul(coeff(slice(X - m1, X), slice(Y - m2, Y)), w4))
    return jnp.fft.irfftn(out_ft, s=(X, Y, Z), axes=(2, 3, 4))


if __name__ == "__main__":
    # Small shapes consistent with the module.
    B, Cin, Cout = 2, 4, 4
    X = Y = Z = 16
    m1 = m2 = m3 = 4

    key = jax.random.PRNGKey(0)
    kx, *kw = jax.random.split(key, 9)

    x = jax.random.normal(kx, (B, Cin, X, Y, Z), dtype=jnp.float32)

    # Deterministic weight init mirroring torch: scale * rand(cfloat).
    scale = 1.0 / (Cin * Cout)
    wshape = (Cin, Cout, m1, m2, m3)

    def make_w(kr, ki):
        return (scale * (jax.random.uniform(kr, wshape)
                         + 1j * jax.random.uniform(ki, wshape))).astype(jnp.complex64)

    w1 = make_w(kw[0], kw[1])
    w2 = make_w(kw[2], kw[3])
    w3 = make_w(kw[4], kw[5])
    w4 = make_w(kw[6], kw[7])

    y = spectral_conv3d(x, w1, w2, w3, w4, m1, m2, m3)
    y = jax.block_until_ready(y)

    y_ref = _reference_spectral_conv3d(x, w1, w2, w3, w4, m1, m2, m3)
    assert y.shape == (B, Cout, X, Y, Z)
    err = float(jnp.max(jnp.abs(y - y_ref)))
    assert jnp.allclose(y, y_ref, atol=1e-4, rtol=1e-4), f"max abs err = {err}"

    print("KERNEL_OK")
</pallas_src>

<mosaic_0001>
module attributes {stable_mosaic.version = 11 : i64} {
  func.func @_compl_mul_kernel(%arg0: i32, %arg1: i32, %arg2: memref<1x4x2x128xf32, #tpu.memory_space<vmem>>, %arg3: memref<1x4x2x128xf32, #tpu.memory_space<vmem>>, %arg4: memref<1x4x4x128xf32, #tpu.memory_space<vmem>>, %arg5: memref<1x4x4x128xf32, #tpu.memory_space<vmem>>, %arg6: memref<1x2x4x128xf32, #tpu.memory_space<vmem>>, %arg7: memref<1x2x4x128xf32, #tpu.memory_space<vmem>>) attributes {dimension_semantics = [#tpu.dimension_semantics<parallel>, #tpu.dimension_semantics<parallel>], iteration_bounds = array<i64: 4, 1>, scalar_prefetch = 0 : i64, scratch_operands = 0 : i64, tpu.core_type = #tpu.core_type<tc>, window_params = [{transform_indices = @transform_0, window_bounds = array<i64: 1, 4, 2, 128>}, {transform_indices = @transform_1, window_bounds = array<i64: 1, 4, 2, 128>}, {transform_indices = @transform_2, window_bounds = array<i64: 1, 4, 4, 128>}, {transform_indices = @transform_3, window_bounds = array<i64: 1, 4, 4, 128>}, {transform_indices = @transform_4, window_bounds = array<i64: 1, 2, 4, 128>}, {transform_indices = @transform_5, window_bounds = array<i64: 1, 2, 4, 128>}]} {
    %cst = arith.constant 0.000000e+00 : f32
    %0 = vector.broadcast %cst : f32 to vector<4x128xf32>
    %cst_0 = arith.constant 0.000000e+00 : f32
    %1 = vector.broadcast %cst_0 : f32 to vector<4x128xf32>
    %c0 = arith.constant 0 : index
    %c0_1 = arith.constant 0 : index
    %c0_2 = arith.constant 0 : index
    %c0_3 = arith.constant 0 : index
    %2 = vector.load %arg2[%c0, %c0_1, %c0_2, %c0_3] : memref<1x4x2x128xf32, #tpu.memory_space<vmem>>, vector<1x1x1x128xf32>
    %3 = vector.shape_cast %2 : vector<1x1x1x128xf32> to vector<1x128xf32>
    %c0_4 = arith.constant 0 : index
    %c0_5 = arith.constant 0 : index
    %c0_6 = arith.constant 0 : index
    %c0_7 = arith.constant 0 : index
    %4 = vector.load %arg3[%c0_4, %c0_5, %c0_6, %c0_7] : memref<1x4x2x128xf32, #tpu.memory_space<vmem>>, vector<1x1x1x128xf32>
    %5 = vector.shape_cast %4 : vector<1x1x1x128xf32> to vector<1x128xf32>
    %c0_8 = arith.constant 0 : index
    %c0_9 = arith.constant 0 : index
    %c0_10 = arith.constant 0 : index
    %c0_11 = arith.constant 0 : index
    %6 = vector.load %arg4[%c0_8, %c0_9, %c0_10, %c0_11] : memref<1x4x4x128xf32, #tpu.memory_space<vmem>>, vector<1x1x4x128xf32>
    %7 = vector.shape_cast %6 : vector<1x1x4x128xf32> to vector<4x128xf32>
    %c0_12 = arith.constant 0 : index
    %c0_13 = arith.constant 0 : index
    %c0_14 = arith.constant 0 : index
    %c0_15 = arith.constant 0 : index
    %8 = vector.load %arg5[%c0_12, %c0_13, %c0_14, %c0_15] : memref<1x4x4x128xf32, #tpu.memory_space<vmem>>, vector<1x1x4x128xf32>
    %9 = vector.shape_cast %8 : vector<1x1x4x128xf32> to vector<4x128xf32>
    %10 = vector.broadcast %3 : vector<1x128xf32> to vector<4x128xf32>
    %11 = arith.mulf %10, %7 : vector<4x128xf32>
    %12 = vector.broadcast %5 : vector<1x128xf32> to vector<4x128xf32>
    %13 = arith.mulf %12, %9 : vector<4x128xf32>
    %14 = arith.subf %11, %13 : vector<4x128xf32>
    %15 = arith.addf %0, %14 : vector<4x128xf32>
    %16 = vector.broadcast %3 : vector<1x128xf32> to vector<4x128xf32>
    %17 = arith.mulf %16, %9 : vector<4x128xf32>
    %18 = vector.broadcast %5 : vector<1x128xf32> to vector<4x128xf32>
    %19 = arith.mulf %18, %7 : vector<4x128xf32>
    %20 = arith.addf %17, %19 : vector<4x128xf32>
    %21 = arith.addf %1, %20 : vector<4x128xf32>
    %c0_16 = arith.constant 0 : index
    %c1 = arith.constant 1 : index
    %c0_17 = arith.constant 0 : index
    %c0_18 = arith.constant 0 : index
    %22 = vector.load %arg2[%c0_16, %c1, %c0_17, %c0_18] : memref<1x4x2x128xf32, #tpu.memory_space<vmem>>, vector<1x1x1x128xf32>
    %23 = vector.shape_cast %22 : vector<1x1x1x128xf32> to vector<1x128xf32>
    %c0_19 = arith.constant 0 : index
    %c1_20 = arith.constant 1 : index
    %c0_21 = arith.constant 0 : index
    %c0_22 = arith.constant 0 : index
    %24 = vector.load %arg3[%c0_19, %c1_20, %c0_21, %c0_22] : memref<1x4x2x128xf32, #tpu.memory_space<vmem>>, vector<1x1x1x128xf32>
    %25 = vector.shape_cast %24 : vector<1x1x1x128xf32> to vector<1x128xf32>
    %c0_23 = arith.constant 0 : index
    %c1_24 = arith.constant 1 : index
    %c0_25 = arith.constant 0 : index
    %c0_26 = arith.constant 0 : index
    %26 = vector.load %arg4[%c0_23, %c1_24, %c0_25, %c0_26] : memref<1x4x4x128xf32, #tpu.memory_space<vmem>>, vector<1x1x4x128xf32>
    %27 = vector.shape_cast %26 : vector<1x1x4x128xf32> to vector<4x128xf32>
    %c0_27 = arith.constant 0 : index
    %c1_28 = arith.constant 1 : index
    %c0_29 = arith.constant 0 : index
    %c0_30 = arith.constant 0 : index
    %28 = vector.load %arg5[%c0_27, %c1_28, %c0_29, %c0_30] : memref<1x4x4x128xf32, #tpu.memory_space<vmem>>, vector<1x1x4x128xf32>
    %29 = vector.shape_cast %28 : vector<1x1x4x128xf32> to vector<4x128xf32>
    %30 = vector.broadcast %23 : vector<1x128xf32> to vector<4x128xf32>
    %31 = arith.mulf %30, %27 : vector<4x128xf32>
    %32 = vector.broadcast %25 : vector<1x128xf32> to vector<4x128xf32>
    %33 = arith.mulf %32, %29 : vector<4x128xf32>
    %34 = arith.subf %31, %33 : vector<4x128xf32>
    %35 = arith.addf %15, %34 : vector<4x128xf32>
    %36 = vector.broadcast %23 : vector<1x128xf32> to vector<4x128xf32>
    %37 = arith.mulf %36, %29 : vector<4x128xf32>
    %38 = vector.broadcast %25 : vector<1x128xf32> to vector<4x128xf32>
    %39 = arith.mulf %38, %27 : vector<4x128xf32>
    %40 = arith.addf %37, %39 : vector<4x128xf32>
    %41 = arith.addf %21, %40 : vector<4x128xf32>
    %c0_31 = arith.constant 0 : index
    %c2 = arith.constant 2 : index
    %c0_32 = arith.constant 0 : index
    %c0_33 = arith.constant 0 : index
    %42 = vector.load %arg2[%c0_31, %c2, %c0_32, %c0_33] : memref<1x4x2x128xf32, #tpu.memory_space<vmem>>, vector<1x1x1x128xf32>
    %43 = vector.shape_cast %42 : vector<1x1x1x128xf32> to vector<1x128xf32>
    %c0_34 = arith.constant 0 : index
    %c2_35 = arith.constant 2 : index
    %c0_36 = arith.constant 0 : index
    %c0_37 = arith.constant 0 : index
    %44 = vector.load %arg3[%c0_34, %c2_35, %c0_36, %c0_37] : memref<1x4x2x128xf32, #tpu.memory_space<vmem>>, vector<1x1x1x128xf32>
    %45 = vector.shape_cast %44 : vector<1x1x1x128xf32> to vector<1x128xf32>
    %c0_38 = arith.constant 0 : index
    %c2_39 = arith.constant 2 : index
    %c0_40 = arith.constant 0 : index
    %c0_41 = arith.constant 0 : index
    %46 = vector.load %arg4[%c0_38, %c2_39, %c0_40, %c0_41] : memref<1x4x4x128xf32, #tpu.memory_space<vmem>>, vector<1x1x4x128xf32>
    %47 = vector.shape_cast %46 : vector<1x1x4x128xf32> to vector<4x128xf32>
    %c0_42 = arith.constant 0 : index
    %c2_43 = arith.constant 2 : index
    %c0_44 = arith.constant 0 : index
    %c0_45 = arith.constant 0 : index
    %48 = vector.load %arg5[%c0_42, %c2_43, %c0_44, %c0_45] : memref<1x4x4x128xf32, #tpu.memory_space<vmem>>, vector<1x1x4x128xf32>
    %49 = vector.shape_cast %48 : vector<1x1x4x128xf32> to vector<4x128xf32>
    %50 = vector.broadcast %43 : vector<1x128xf32> to vector<4x128xf32>
    %51 = arith.mulf %50, %47 : vector<4x128xf32>
    %52 = vector.broadcast %45 : vector<1x128xf32> to vector<4x128xf32>
    %53 = arith.mulf %52, %49 : vector<4x128xf32>
    %54 = arith.subf %51, %53 : vector<4x128xf32>
    %55 = arith.addf %35, %54 : vector<4x128xf32>
    %56 = vector.broadcast %43 : vector<1x128xf32> to vector<4x128xf32>
    %57 = arith.mulf %56, %49 : vector<4x128xf32>
    %58 = vector.broadcast %45 : vector<1x128xf32> to vector<4x128xf32>
    %59 = arith.mulf %58, %47 : vector<4x128xf32>
    %60 = arith.addf %57, %59 : vector<4x128xf32>
    %61 = arith.addf %41, %60 : vector<4x128xf32>
    %c0_46 = arith.constant 0 : index
    %c3 = arith.constant 3 : index
    %c0_47 = arith.constant 0 : index
    %c0_48 = arith.constant 0 : index
    %62 = vector.load %arg2[%c0_46, %c3, %c0_47, %c0_48] : memref<1x4x2x128xf32, #tpu.memory_space<vmem>>, vector<1x1x1x128xf32>
    %63 = vector.shape_cast %62 : vector<1x1x1x128xf32> to vector<1x128xf32>
    %c0_49 = arith.constant 0 : index
    %c3_50 = arith.constant 3 : index
    %c0_51 = arith.constant 0 : index
    %c0_52 = arith.constant 0 : index
    %64 = vector.load %arg3[%c0_49, %c3_50, %c0_51, %c0_52] : memref<1x4x2x128xf32, #tpu.memory_space<vmem>>, vector<1x1x1x128xf32>
    %65 = vector.shape_cast %64 : vector<1x1x1x128xf32> to vector<1x128xf32>
    %c0_53 = arith.constant 0 : index
    %c3_54 = arith.constant 3 : index
    %c0_55 = arith.constant 0 : index
    %c0_56 = arith.constant 0 : index
    %66 = vector.load %arg4[%c0_53, %c3_54, %c0_55, %c0_56] : memref<1x4x4x128xf32, #tpu.memory_space<vmem>>, vector<1x1x4x128xf32>
    %67 = vector.shape_cast %66 : vector<1x1x4x128xf32> to vector<4x128xf32>
    %c0_57 = arith.constant 0 : index
    %c3_58 = arith.constant 3 : index
    %c0_59 = arith.constant 0 : index
    %c0_60 = arith.constant 0 : index
    %68 = vector.load %arg5[%c0_57, %c3_58, %c0_59, %c0_60] : memref<1x4x4x128xf32, #tpu.memory_space<vmem>>, vector<1x1x4x128xf32>
    %69 = vector.shape_cast %68 : vector<1x1x4x128xf32> to vector<4x128xf32>
    %70 = vector.broadcast %63 : vector<1x128xf32> to vector<4x128xf32>
    %71 = arith.mulf %70, %67 : vector<4x128xf32>
    %72 = vector.broadcast %65 : vector<1x128xf32> to vector<4x128xf32>
    %73 = arith.mulf %72, %69 : vector<4x128xf32>
    %74 = arith.subf %71, %73 : vector<4x128xf32>
    %75 = arith.addf %55, %74 : vector<4x128xf32>
    %76 = vector.broadcast %63 : vector<1x128xf32> to vector<4x128xf32>
    %77 = arith.mulf %76, %69 : vector<4x128xf32>
    %78 = vector.broadcast %65 : vector<1x128xf32> to vector<4x128xf32>
    %79 = arith.mulf %78, %67 : vector<4x128xf32>
    %80 = arith.addf %77, %79 : vector<4x128xf32>
    %81 = arith.addf %61, %80 : vector<4x128xf32>
    %c0_61 = arith.constant 0 : index
    %c0_62 = arith.constant 0 : index
    %c0_63 = arith.constant 0 : index
    %c0_64 = arith.constant 0 : index
    %82 = vector.load %arg6[%c0_61, %c0_62, %c0_63, %c0_64] : memref<1x2x4x128xf32, #tpu.memory_space<vmem>>, vector<1x1x4x128xf32>
    %83 = vector.shape_cast %82 : vector<1x1x4x128xf32> to vector<4x128xf32>
    %84 = vector.shape_cast %75 : vector<4x128xf32> to vector<1x1x4x128xf32>
    tpu.vector_store %arg6[%c0_61, %c0_62, %c0_63, %c0_64], %84 {strides = array<i32>} : memref<1x2x4x128xf32, #tpu.memory_space<vmem>>, vector<1x1x4x128xf32>,
    %c0_65 = arith.constant 0 : index
    %c0_66 = arith.constant 0 : index
    %c0_67 = arith.constant 0 : index
    %c0_68 = arith.constant 0 : index
    %85 = vector.load %arg7[%c0_65, %c0_66, %c0_67, %c0_68] : memref<1x2x4x128xf32, #tpu.memory_space<vmem>>, vector<1x1x4x128xf32>
    %86 = vector.shape_cast %85 : vector<1x1x4x128xf32> to vector<4x128xf32>
    %87 = vector.shape_cast %81 : vector<4x128xf32> to vector<1x1x4x128xf32>
    tpu.vector_store %arg7[%c0_65, %c0_66, %c0_67, %c0_68], %87 {strides = array<i32>} : memref<1x2x4x128xf32, #tpu.memory_space<vmem>>, vector<1x1x4x128xf32>,
    %cst_69 = arith.constant 0.000000e+00 : f32
    %88 = vector.broadcast %cst_69 : f32 to vector<4x128xf32>
    %cst_70 = arith.constant 0.000000e+00 : f32
    %89 = vector.broadcast %cst_70 : f32 to vector<4x128xf32>
    %c0_71 = arith.constant 0 : index
    %c0_72 = arith.constant 0 : index
    %c1_73 = arith.constant 1 : index
    %c0_74 = arith.constant 0 : index
    %90 = vector.load %arg2[%c0_71, %c0_72, %c1_73, %c0_74] : memref<1x4x2x128xf32, #tpu.memory_space<vmem>>, vector<1x1x1x128xf32>
    %91 = vector.shape_cast %90 : vector<1x1x1x128xf32> to vector<1x128xf32>
    %c0_75 = arith.constant 0 : index
    %c0_76 = arith.constant 0 : index
    %c1_77 = arith.constant 1 : index
    %c0_78 = arith.constant 0 : index
    %92 = vector.load %arg3[%c0_75, %c0_76, %c1_77, %c0_78] : memref<1x4x2x128xf32, #tpu.memory_space<vmem>>, vector<1x1x1x128xf32>
    %93 = vector.shape_cast %92 : vector<1x1x1x128xf32> to vector<1x128xf32>
    %c0_79 = arith.constant 0 : index
    %c0_80 = arith.constant 0 : index
    %c0_81 = arith.constant 0 : index
    %c0_82 = arith.constant 0 : index
    %94 = vector.load %arg4[%c0_79, %c0_80, %c0_81, %c0_82] : memref<1x4x4x128xf32, #tpu.memory_space<vmem>>, vector<1x1x4x128xf32>
    %95 = vector.shape_cast %94 : vector<1x1x4x128xf32> to vector<4x128xf32>
    %c0_83 = arith.constant 0 : index
    %c0_84 = arith.constant 0 : index
    %c0_85 = arith.constant 0 : index
    %c0_86 = arith.constant 0 : index
    %96 = vector.load %arg5[%c0_83, %c0_84, %c0_85, %c0_86] : memref<1x4x4x128xf32, #tpu.memory_space<vmem>>, vector<1x1x4x128xf32>
    %97 = vector.shape_cast %96 : vector<1x1x4x128xf32> to vector<4x128xf32>
    %98 = vector.broadcast %91 : vector<1x128xf32> to vector<4x128xf32>
    %99 = arith.mulf %98, %95 : vector<4x128xf32>
    %100 = vector.broadcast %93 : vector<1x128xf32> to vector<4x128xf32>
    %101 = arith.mulf %100, %97 : vector<4x128xf32>
    %102 = arith.subf %99, %101 : vector<4x128xf32>
    %103 = arith.addf %88, %102 : vector<4x128xf32>
    %104 = vector.broadcast %91 : vector<1x128xf32> to vector<4x128xf32>
    %105 = arith.mulf %104, %97 : vector<4x128xf32>
    %106 = vector.broadcast %93 : vector<1x128xf32> to vector<4x128xf32>
    %107 = arith.mulf %106, %95 : vector<4x128xf32>
    %108 = arith.addf %105, %107 : vector<4x128xf32>
    %109 = arith.addf %89, %108 : vector<4x128xf32>
    %c0_87 = arith.constant 0 : index
    %c1_88 = arith.constant 1 : index
    %c1_89 = arith.constant 1 : index
    %c0_90 = arith.constant 0 : index
    %110 = vector.load %arg2[%c0_87, %c1_88, %c1_89, %c0_90] : memref<1x4x2x128xf32, #tpu.memory_space<vmem>>, vector<1x1x1x128xf32>
    %111 = vector.shape_cast %110 : vector<1x1x1x128xf32> to vector<1x128xf32>
    %c0_91 = arith.constant 0 : index
    %c1_92 = arith.constant 1 : index
    %c1_93 = arith.constant 1 : index
    %c0_94 = arith.constant 0 : index
    %112 = vector.load %arg3[%c0_91, %c1_92, %c1_93, %c0_94] : memref<1x4x2x128xf32, #tpu.memory_space<vmem>>, vector<1x1x1x128xf32>
    %113 = vector.shape_cast %112 : vector<1x1x1x128xf32> to vector<1x128xf32>
    %c0_95 = arith.constant 0 : index
    %c1_96 = arith.constant 1 : index
    %c0_97 = arith.constant 0 : index
    %c0_98 = arith.constant 0 : index
    %114 = vector.load %arg4[%c0_95, %c1_96, %c0_97, %c0_98] : memref<1x4x4x128xf32, #tpu.memory_space<vmem>>, vector<1x1x4x128xf32>
    %115 = vector.shape_cast %114 : vector<1x1x4x128xf32> to vector<4x128xf32>
    %c0_99 = arith.constant 0 : index
    %c1_100 = arith.constant 1 : index
    %c0_101 = arith.constant 0 : index
    %c0_102 = arith.constant 0 : index
    %116 = vector.load %arg5[%c0_99, %c1_100, %c0_101, %c0_102] : memref<1x4x4x128xf32, #tpu.memory_space<vmem>>, vector<1x1x4x128xf32>
    %117 = vector.shape_cast %116 : vector<1x1x4x128xf32> to vector<4x128xf32>
    %118 = vector.broadcast %111 : vector<1x128xf32> to vector<4x128xf32>
    %119 = arith.mulf %118, %115 : vector<4x128xf32>
    %120 = vector.broadcast %113 : vector<1x128xf32> to vector<4x128xf32>
    %121 = arith.mulf %120, %117 : vector<4x128xf32>
    %122 = arith.subf %119, %121 : vector<4x128xf32>
    %123 = arith.addf %103, %122 : vector<4x128xf32>
    %124 = vector.broadcast %111 : vector<1x128xf32> to vector<4x128xf32>
    %125 = arith.mulf %124, %117 : vector<4x128xf32>
    %126 = vector.broadcast %113 : vector<1x128xf32> to vector<4x128xf32>
    %127 = arith.mulf %126, %115 : vector<4x128xf32>
    %128 = arith.addf %125, %127 : vector<4x128xf32>
    %129 = arith.addf %109, %128 : vector<4x128xf32>
    %c0_103 = arith.constant 0 : index
    %c2_104 = arith.constant 2 : index
    %c1_105 = arith.constant 1 : index
    %c0_106 = arith.constant 0 : index
    %130 = vector.load %arg2[%c0_103, %c2_104, %c1_105, %c0_106] : memref<1x4x2x128xf32, #tpu.memory_space<vmem>>, vector<1x1x1x128xf32>
    %131 = vector.shape_cast %130 : vector<1x1x1x128xf32> to vector<1x128xf32>
    %c0_107 = arith.constant 0 : index
    %c2_108 = arith.constant 2 : index
    %c1_109 = arith.constant 1 : index
    %c0_110 = arith.constant 0 : index
    %132 = vector.load %arg3[%c0_107, %c2_108, %c1_109, %c0_110] : memref<1x4x2x128xf32, #tpu.memory_space<vmem>>, vector<1x1x1x128xf32>
    %133 = vector.shape_cast %132 : vector<1x1x1x128xf32> to vector<1x128xf32>
    %c0_111 = arith.constant 0 : index
    %c2_112 = arith.constant 2 : index
    %c0_113 = arith.constant 0 : index
    %c0_114 = arith.constant 0 : index
    %134 = vector.load %arg4[%c0_111, %c2_112, %c0_113, %c0_114] : memref<1x4x4x128xf32, #tpu.memory_space<vmem>>, vector<1x1x4x128xf32>
    %135 = vector.shape_cast %134 : vector<1x1x4x128xf32> to vector<4x128xf32>
    %c0_115 = arith.constant 0 : index
    %c2_116 = arith.constant 2 : index
    %c0_117 = arith.constant 0 : index
    %c0_118 = arith.constant 0 : index
    %136 = vector.load %arg5[%c0_115, %c2_116, %c0_117, %c0_118] : memref<1x4x4x128xf32, #tpu.memory_space<vmem>>, vector<1x1x4x128xf32>
    %137 = vector.shape_cast %136 : vector<1x1x4x128xf32> to vector<4x128xf32>
    %138 = vector.broadcast %131 : vector<1x128xf32> to vector<4x128xf32>
    %139 = arith.mulf %138, %135 : vector<4x128xf32>
    %140 = vector.broadcast %133 : vector<1x128xf32> to vector<4x128xf32>
    %141 = arith.mulf %140, %137 : vector<4x128xf32>
    %142 = arith.subf %139, %141 : vector<4x128xf32>
    %143 = arith.addf %123, %142 : vector<4x128xf32>
    %144 = vector.broadcast %131 : vector<1x128xf32> to vector<4x128xf32>
    %145 = arith.mulf %144, %137 : vector<4x128xf32>
    %146 = vector.broadcast %133 : vector<1x128xf32> to vector<4x128xf32>
    %147 = arith.mulf %146, %135 : vector<4x128xf32>
    %148 = arith.addf %145, %147 : vector<4x128xf32>
    %149 = arith.addf %129, %148 : vector<4x128xf32>
    %c0_119 = arith.constant 0 : index
    %c3_120 = arith.constant 3 : index
    %c1_121 = arith.constant 1 : index
    %c0_122 = arith.constant 0 : index
    %150 = vector.load %arg2[%c0_119, %c3_120, %c1_121, %c0_122] : memref<1x4x2x128xf32, #tpu.memory_space<vmem>>, vector<1x1x1x128xf32>
    %151 = vector.shape_cast %150 : vector<1x1x1x128xf32> to vector<1x128xf32>
    %c0_123 = arith.constant 0 : index
    %c3_124 = arith.constant 3 : index
    %c1_125 = arith.constant 1 : index
    %c0_126 = arith.constant 0 : index
    %152 = vector.load %arg3[%c0_123, %c3_124, %c1_125, %c0_126] : memref<1x4x2x128xf32, #tpu.memory_space<vmem>>, vector<1x1x1x128xf32>
    %153 = vector.shape_cast %152 : vector<1x1x1x128xf32> to vector<1x128xf32>
    %c0_127 = arith.constant 0 : index
    %c3_128 = arith.constant 3 : index
    %c0_129 = arith.constant 0 : index
    %c0_130 = arith.constant 0 : index
    %154 = vector.load %arg4[%c0_127, %c3_128, %c0_129, %c0_130] : memref<1x4x4x128xf32, #tpu.memory_space<vmem>>, vector<1x1x4x128xf32>
    %155 = vector.shape_cast %154 : vector<1x1x4x128xf32> to vector<4x128xf32>
    %c0_131 = arith.constant 0 : index
    %c3_132 = arith.constant 3 : index
    %c0_133 = arith.constant 0 : index
    %c0_134 = arith.constant 0 : index
    %156 = vector.load %arg5[%c0_131, %c3_132, %c0_133, %c0_134] : memref<1x4x4x128xf32, #tpu.memory_space<vmem>>, vector<1x1x4x128xf32>
    %157 = vector.shape_cast %156 : vector<1x1x4x128xf32> to vector<4x128xf32>
    %158 = vector.broadcast %151 : vector<1x128xf32> to vector<4x128xf32>
    %159 = arith.mulf %158, %155 : vector<4x128xf32>
    %160 = vector.broadcast %153 : vector<1x128xf32> to vector<4x128xf32>
    %161 = arith.mulf %160, %157 : vector<4x128xf32>
    %162 = arith.subf %159, %161 : vector<4x128xf32>
    %163 = arith.addf %143, %162 : vector<4x128xf32>
    %164 = vector.broadcast %151 : vector<1x128xf32> to vector<4x128xf32>
    %165 = arith.mulf %164, %157 : vector<4x128xf32>
    %166 = vector.broadcast %153 : vector<1x128xf32> to vector<4x128xf32>
    %167 = arith.mulf %166, %155 : vector<4x128xf32>
    %168 = arith.addf %165, %167 : vector<4x128xf32>
    %169 = arith.addf %149, %168 : vector<4x128xf32>
    %c0_135 = arith.constant 0 : index
    %c1_136 = arith.constant 1 : index
    %c0_137 = arith.constant 0 : index
    %c0_138 = arith.constant 0 : index
    %170 = vector.load %arg6[%c0_135, %c1_136, %c0_137, %c0_138] : memref<1x2x4x128xf32, #tpu.memory_space<vmem>>, vector<1x1x4x128xf32>
    %171 = vector.shape_cast %170 : vector<1x1x4x128xf32> to vector<4x128xf32>
    %172 = vector.shape_cast %163 : vector<4x128xf32> to vector<1x1x4x128xf32>
    tpu.vector_store %arg6[%c0_135, %c1_136, %c0_137, %c0_138], %172 {strides = array<i32>} : memref<1x2x4x128xf32, #tpu.memory_space<vmem>>, vector<1x1x4x128xf32>,
    %c0_139 = arith.constant 0 : index
    %c1_140 = arith.constant 1 : index
    %c0_141 = arith.constant 0 : index
    %c0_142 = arith.constant 0 : index
    %173 = vector.load %arg7[%c0_139, %c1_140, %c0_141, %c0_142] : memref<1x2x4x128xf32, #tpu.memory_space<vmem>>, vector<1x1x4x128xf32>
    %174 = vector.shape_cast %173 : vector<1x1x4x128xf32> to vector<4x128xf32>
    %175 = vector.shape_cast %169 : vector<4x128xf32> to vector<1x1x4x128xf32>
    tpu.vector_store %arg7[%c0_139, %c1_140, %c0_141, %c0_142], %175 {strides = array<i32>} : memref<1x2x4x128xf32, #tpu.memory_space<vmem>>, vector<1x1x4x128xf32>,
    return
  }
  func.func @transform_0(%arg0: i32, %arg1: i32) -> (i32, i32, i32, i32) {
    %c0_i32 = arith.constant 0 : i32
    %c0_i32_0 = arith.constant 0 : i32
    %c0_i32_1 = arith.constant 0 : i32
    return %arg0, %c0_i32, %c0_i32_0, %arg1 : i32, i32, i32, i32
  }
  func.func @transform_1(%arg0: i32, %arg1: i32) -> (i32, i32, i32, i32) {
    %c0_i32 = arith.constant 0 : i32
    %c0_i32_0 = arith.constant 0 : i32
    %c0_i32_1 = arith.constant 0 : i32
    return %arg0, %c0_i32, %c0_i32_0, %arg1 : i32, i32, i32, i32
  }
  func.func @transform_2(%arg0: i32, %arg1: i32) -> (i32, i32, i32, i32) {
    %c0_i32 = arith.constant 0 : i32
    %c0_i32_0 = arith.constant 0 : i32
    %c0_i32_1 = arith.constant 0 : i32
    return %arg0, %c0_i32, %c0_i32_0, %arg1 : i32, i32, i32, i32
  }
  func.func @transform_3(%arg0: i32, %arg1: i32) -> (i32, i32, i32, i32) {
    %c0_i32 = arith.constant 0 : i32
    %c0_i32_0 = arith.constant 0 : i32
    %c0_i32_1 = arith.constant 0 : i32
    return %arg0, %c0_i32, %c0_i32_0, %arg1 : i32, i32, i32, i32
  }
  func.func @transform_4(%arg0: i32, %arg1: i32) -> (i32, i32, i32, i32) {
    %c0_i32 = arith.constant 0 : i32
    %c0_i32_0 = arith.constant 0 : i32
    %c0_i32_1 = arith.constant 0 : i32
    return %arg0, %c0_i32, %c0_i32_0, %arg1 : i32, i32, i32, i32
  }
  func.func @transform_5(%arg0: i32, %arg1: i32) -> (i32, i32, i32, i32) {
    %c0_i32 = arith.constant 0 : i32
    %c0_i32_0 = arith.constant 0 : i32
    %c0_i32_1 = arith.constant 0 : i32
    return %arg0, %c0_i32, %c0_i32_0, %arg1 : i32, i32, i32, i32
  }
}

</mosaic_0001>

<llo_original>
// kernel: custom-call
$region0: #{custom-call}
  %s0 = inlined_call_operand.hbm [shape: c64[4,4,4,4,4], index: 0, kind: input, shape index: {}]
  %s1 = inlined_call_operand.vmem [shape: f32[4,4,4,4,4], index: 1, kind: output, shape index: {}]
  $region1: #{custom-call} parent=0
    #allocation0 [shape = 's32[1]{0}', space=sflag, size = 0x4, scoped, tag = 'scoped memory for custom-call']
    %2 = vsyncpa [#allocation0], 0
    %s3 = sshll.u32 %s1, 4
    %s4 = int_to_ptr.vmem [resolvable:$true] %s3
    %6 = dma.hbm_to_vmem [thread:$0]  %s0, 4096, %s4, [#allocation0]
    %7 = dma.done [#allocation0], 4096
    %8 = vsyncpa [#allocation0], 1

// kernel: custom-call.1
$region0: #{custom-call.1}
  %s0 = inlined_call_operand.hbm [shape: c64[4,4,4,4,4], index: 0, kind: input, shape index: {}]
  %s1 = inlined_call_operand.vmem [shape: f32[4,4,4,4,4], index: 1, kind: output, shape index: {}]
  %s2 = scalar_lea.hbm %s0, 4096
  $region1: #{custom-call.1} parent=0
    #allocation0 [shape = 's32[1]{0}', space=sflag, size = 0x4, scoped, tag = 'scoped memory for custom-call.1']
    %3 = vsyncpa [#allocation0], 0
    %s4 = sshll.u32 %s1, 4
    %s5 = int_to_ptr.vmem [resolvable:$true] %s4
    %7 = dma.hbm_to_vmem [thread:$0]  %s2, 4096, %s5, [#allocation0]
    %8 = dma.done [#allocation0], 4096
    %9 = vsyncpa [#allocation0], 1

// kernel: spectral_conv3d.1
$region0: #{spectral_conv3d.1}
  #allocation0 [shape = 'u32[]', space=smem, size = 0x4, offset = 0x4, fixed_abs, tag = 'smem constant byte address 0x4 - core index']
  #allocation1 [shape = 'u32[144,128]{1,0:T(1,128)}', space=vmem, size = 0x12000, scoped, tag = 'internal scratch']
  %s0 = inlined_call_operand.vmem [shape: f32[4,4,2,128], index: 0, kind: input, shape index: {}]
  %s1 = inlined_call_operand.vmem [shape: f32[4,4,2,128], index: 1, kind: input, shape index: {}]
  %s2 = inlined_call_operand.vmem [shape: f32[4,4,4,128], index: 2, kind: input, shape index: {}]
  %s3 = inlined_call_operand.vmem [shape: f32[4,4,4,128], index: 3, kind: input, shape index: {}]
  %s4 = inlined_call_operand.vmem [shape: f32[4,2,4,128], index: 4, kind: output, shape index: {0}]
  %s5 = inlined_call_operand.vmem [shape: f32[4,2,4,128], index: 5, kind: output, shape index: {1}]
  %6 = xla_tuple %s4, %s5
  %s7 = sld [smem:[#allocation0]]
  $region57: #{spectral_conv3d.1} parent=0
    _
  %s9 = ssub.s32 1, %s7
  %s10 = scalar_select 0, %s9, %s7
  loop: start=0, step=1, limit=6
  $region2: #{spectral_conv3d.1} parent=0 // loop_pre_header
    _
  $region3: #{spectral_conv3d.1} parent=0 // loop_header
    %s12 = sphi 0, %s16
    %p13 = scmp.ge.s32.totalorder %s12, 6
    %s19 = sphi 0, %s31
    %s20 = sphi 0, %s27
    %s21 = sphi 0, %s19
    %s22 = sphi 0, %s20
    %s23 = sphi 0, %s21
    %s24 = sphi 0, %s22
    %s36 = sphi 0, %s38
    %s39 = sphi 0, %s36
    %s40 = sphi 0, %s39
    %s56 = sphi 0, %s40
    %s64 = sphi 0, %s66
    %s67 = sphi 0, %s64
    %s68 = sphi 0, %s67
    %s84 = sphi 0, %s68
    %s92 = sphi 0, %s94
    %s95 = sphi 0, %s92
    %s96 = sphi 0, %s95
    %s112 = sphi 0, %s96
    %s120 = sphi 0, %s122
    %s123 = sphi 0, %s120
    %s124 = sphi 0, %s123
    %s140 = sphi 0, %s124
    %s148 = sphi 0, %s150
    %s151 = sphi 0, %s148
    %s152 = sphi 0, %s151
    %s168 = sphi 0, %s152
    %s176 = sphi 0, %s178
    %s179 = sphi 0, %s176
    %s180 = sphi 0, %s179
    %s196 = sphi 0, %s180
  $region4: #{spectral_conv3d.1} parent=0 // loop_header_branch
    %15 = sbr.rel (%p13) target = $region8
  $region5: #{spectral_conv3d.1} parent=0 // loop_body
    %s17 = ssub.s32 %s12, 1
    %s18 = ssub.s32 %s12, 2
    %s25 = sadd.s32 1, %s20
    %p26 = scmp.ge.s32.totalorder %s25, 1
    %s27 = scalar_select %p26, 0, %s25
    %s28 = sadd.s32 1, %s19
    %s29 = scalar_select %p26, %s28, %s19
    %p30 = scmp.ge.s32.totalorder %s29, 4
    %s31 = scalar_select %p30, 0, %s29
    %s32 = ssub.s32 %s19, %s31
    %s33 = ssub.s32 %s20, %s27
    %s34 = sor.u32 %s32, %s33
    %p35 = scmp.eq.s32.totalorder %s34, 0
    %s37 = sadd.s32 %s36, 1
    %s38 = scalar_select %p35, %s36, %s37
    %p41 = pneg %p35
    %p42 = scmp.eq.s32.totalorder %s12, 3
    %p43 = por %p41, %p42
    %p44 = scmp.ne.s32.totalorder %s36, %s39
    %p45 = scmp.eq.s32.totalorder %s12, 0
    %p46 = por %p44, %p45
    %p47 = scmp.ne.s32.totalorder %s36, %s39
    %p48 = scmp.eq.s32.totalorder %s17, 3
    %p49 = por %p47, %p48
    %p50 = scmp.ne.s32.totalorder %s39, %s40
    %p51 = scmp.eq.s32.totalorder %s17, 0
    %p52 = por %p50, %p51
    %p53 = scmp.ne.s32.totalorder %s39, %s40
    %p54 = scmp.eq.s32.totalorder %s18, 3
    %p55 = por %p53, %p54
    %p57 = scmp.ne.s32.totalorder %s40, %s56
    %p58 = scmp.eq.s32.totalorder %s18, 0
    %p59 = por %p57, %p58
    %s60 = ssub.s32 %s19, %s31
    %s61 = ssub.s32 %s20, %s27
    %s62 = sor.u32 %s60, %s61
    %p63 = scmp.eq.s32.totalorder %s62, 0
    %s65 = sadd.s32 %s64, 1
    %s66 = scalar_select %p63, %s64, %s65
    %p69 = pneg %p63
    %p70 = scmp.eq.s32.totalorder %s12, 3
    %p71 = por %p69, %p70
    %p72 = scmp.ne.s32.totalorder %s64, %s67
    %p73 = scmp.eq.s32.totalorder %s12, 0
    %p74 = por %p72, %p73
    %p75 = scmp.ne.s32.totalorder %s64, %s67
    %p76 = scmp.eq.s32.totalorder %s17, 3
    %p77 = por %p75, %p76
    %p78 = scmp.ne.s32.totalorder %s67, %s68
    %p79 = scmp.eq.s32.totalorder %s17, 0
    %p80 = por %p78, %p79
    %p81 = scmp.ne.s32.totalorder %s67, %s68
    %p82 = scmp.eq.s32.totalorder %s18, 3
    %p83 = por %p81, %p82
    %p85 = scmp.ne.s32.totalorder %s68, %s84
    %p86 = scmp.eq.s32.totalorder %s18, 0
    %p87 = por %p85, %p86
    %s88 = ssub.s32 %s19, %s31
    %s89 = ssub.s32 %s20, %s27
    %s90 = sor.u32 %s88, %s89
    %p91 = scmp.eq.s32.totalorder %s90, 0
    %s93 = sadd.s32 %s92, 1
    %s94 = scalar_select %p91, %s92, %s93
    %p97 = pneg %p91
    %p98 = scmp.eq.s32.totalorder %s12, 3
    %p99 = por %p97, %p98
    %p100 = scmp.ne.s32.totalorder %s92, %s95
    %p101 = scmp.eq.s32.totalorder %s12, 0
    %p102 = por %p100, %p101
    %p103 = scmp.ne.s32.totalorder %s92, %s95
    %p104 = scmp.eq.s32.totalorder %s17, 3
    %p105 = por %p103, %p104
    %p106 = scmp.ne.s32.totalorder %s95, %s96
    %p107 = scmp.eq.s32.totalorder %s17, 0
    %p108 = por %p106, %p107
    %p109 = scmp.ne.s32.totalorder %s95, %s96
    %p110 = scmp.eq.s32.totalorder %s18, 3
    %p111 = por %p109, %p110
    %p113 = scmp.ne.s32.totalorder %s96, %s112
    %p114 = scmp.eq.s32.totalorder %s18, 0
    %p115 = por %p113, %p114
    %s116 = ssub.s32 %s19, %s31
    %s117 = ssub.s32 %s20, %s27
    %s118 = sor.u32 %s116, %s117
    %p119 = scmp.eq.s32.totalorder %s118, 0
    %s121 = sadd.s32 %s120, 1
    %s122 = scalar_select %p119, %s120, %s121
    %p125 = pneg %p119
    %p126 = scmp.eq.s32.totalorder %s12, 3
    %p127 = por %p125, %p126
    %p128 = scmp.ne.s32.totalorder %s120, %s123
    %p129 = scmp.eq.s32.totalorder %s12, 0
    %p130 = por %p128, %p129
    %p131 = scmp.ne.s32.totalorder %s120, %s123
    %p132 = scmp.eq.s32.totalorder %s17, 3
    %p133 = por %p131, %p132
    %p134 = scmp.ne.s32.totalorder %s123, %s124
    %p135 = scmp.eq.s32.totalorder %s17, 0
    %p136 = por %p134, %p135
    %p137 = scmp.ne.s32.totalorder %s123, %s124
    %p138 = scmp.eq.s32.totalorder %s18, 3
    %p139 = por %p137, %p138
    %p141 = scmp.ne.s32.totalorder %s124, %s140
    %p142 = scmp.eq.s32.totalorder %s18, 0
    %p143 = por %p141, %p142
    %s144 = ssub.s32 %s19, %s31
    %s145 = ssub.s32 %s20, %s27
    %s146 = sor.u32 %s144, %s145
    %p147 = scmp.eq.s32.totalorder %s146, 0
    %s149 = sadd.s32 %s148, 1
    %s150 = scalar_select %p147, %s148, %s149
    %p153 = pneg %p147
    %p154 = scmp.eq.s32.totalorder %s12, 3
    %p155 = por %p153, %p154
    %p156 = scmp.ne.s32.totalorder %s148, %s151
    %p157 = scmp.eq.s32.totalorder %s12, 0
    %p158 = por %p156, %p157
    %p159 = scmp.ne.s32.totalorder %s148, %s151
    %p160 = scmp.eq.s32.totalorder %s17, 3
    %p161 = por %p159, %p160
    %p162 = scmp.ne.s32.totalorder %s151, %s152
    %p163 = scmp.eq.s32.totalorder %s17, 0
    %p164 = por %p162, %p163
    %p165 = scmp.ne.s32.totalorder %s151, %s152
    %p166 = scmp.eq.s32.totalorder %s18, 3
    %p167 = por %p165, %p166
    %p169 = scmp.ne.s32.totalorder %s152, %s168
    %p170 = scmp.eq.s32.totalorder %s18, 0
    %p171 = por %p169, %p170
    %s172 = ssub.s32 %s19, %s31
    %s173 = ssub.s32 %s20, %s27
    %s174 = sor.u32 %s172, %s173
    %p175 = scmp.eq.s32.totalorder %s174, 0
    %s177 = sadd.s32 %s176, 1
    %s178 = scalar_select %p175, %s176, %s177
    %p181 = pneg %p175
    %p182 = scmp.eq.s32.totalorder %s12, 3
    %p183 = por %p181, %p182
    %p184 = scmp.ne.s32.totalorder %s176, %s179
    %p185 = scmp.eq.s32.totalorder %s12, 0
    %p186 = por %p184, %p185
    %p187 = scmp.ne.s32.totalorder %s176, %s179
    %p188 = scmp.eq.s32.totalorder %s17, 3
    %p189 = por %p187, %p188
    %p190 = scmp.ne.s32.totalorder %s179, %s180
    %p191 = scmp.eq.s32.totalorder %s17, 0
    %p192 = por %p190, %p191
    %p193 = scmp.ne.s32.totalorder %s179, %s180
    %p194 = scmp.eq.s32.totalorder %s18, 3
    %p195 = por %p193, %p194
    %p197 = scmp.ne.s32.totalorder %s180, %s196
    %p198 = scmp.eq.s32.totalorder %s18, 0
    %p199 = por %p197, %p198
    %p200 = scmp.le.s32.totalorder 1, %s12
    %p201 = scmp.lt.s32.totalorder %s12, 5
    %p202 = pnand %p200, %p201
    %p203 = pneg %p202
    // Predicated region
    $region9: #{spectral_conv3d.1} parent=5 // pred_check
      _
    $region10: #{spectral_conv3d.1} parent=5 // pred_check_branch
      %205 = sbr.rel (%p202) target = $region12
    $region11: #{spectral_conv3d.1} parent=5 // pred_region
      %s206 = ssub.s32 %s12, 1
    $region12: #{spectral_conv3d.1} parent=5 // pred_fallthru
      _
    %p207 = scmp.lt.s32.totalorder %s12, 4
    // Predicated region
    $region13: #{spectral_conv3d.1} parent=5 // pred_check
      %p208 = pneg %p207
    $region14: #{spectral_conv3d.1} parent=5 // pred_check_branch
      %210 = sbr.rel (%p208) target = $region16
    $region15: #{spectral_conv3d.1} parent=5 // pred_region
      // Predicated region
      $region17: #{spectral_conv3d.1} parent=15 // pred_check
        %p211 = pneg %p46
      $region18: #{spectral_conv3d.1} parent=15 // pred_check_branch
        %213 = sbr.rel (%p211) target = $region20
      $region19: #{spectral_conv3d.1} parent=15 // pred_region
        %p214 = scmp.lt.s32.totalorder %s19, 3
        %s215 = scalar_select %p214, %s19, 3
        %p216 = scmp.lt.s32.totalorder %s20, 0
        %s217 = scalar_select %p216, %s20, 0
        %s218 = smul.addr %s215, 4
        %s219 = sadd.s32 %s217, %s218
        %s220 = smul.addr %s219, 2
        %s221 = scalar_lea.vmem %s0, %s220
      $region20: #{spectral_conv3d.1} parent=15 // pred_fallthru
        _
      // Predicated region
      $region21: #{spectral_conv3d.1} parent=15 // pred_check
        %p222 = pneg %p74
      $region22: #{spectral_conv3d.1} parent=15 // pred_check_branch
        %224 = sbr.rel (%p222) target = $region24
      $region23: #{spectral_conv3d.1} parent=15 // pred_region
        %p225 = scmp.lt.s32.totalorder %s19, 3
        %s226 = scalar_select %p225, %s19, 3
        %p227 = scmp.lt.s32.totalorder %s20, 0
        %s228 = scalar_select %p227, %s20, 0
        %s229 = smul.addr %s226, 4
        %s230 = sadd.s32 %s228, %s229
        %s231 = smul.addr %s230, 2
        %s232 = scalar_lea.vmem %s1, %s231
      $region24: #{spectral_conv3d.1} parent=15 // pred_fallthru
        _
      // Predicated region
      $region25: #{spectral_conv3d.1} parent=15 // pred_check
        %p233 = pneg %p102
      $region26: #{spectral_conv3d.1} parent=15 // pred_check_branch
        %235 = sbr.rel (%p233) target = $region28
      $region27: #{spectral_conv3d.1} parent=15 // pred_region
        %p236 = scmp.lt.s32.totalorder %s19, 3
        %s237 = scalar_select %p236, %s19, 3
        %p238 = scmp.lt.s32.totalorder %s20, 0
        %s239 = scalar_select %p238, %s20, 0
        %s240 = smul.addr %s237, 4
        %s241 = sadd.s32 %s239, %s240
        %s242 = smul.addr %s241, 4
        %s243 = scalar_lea.vmem %s2, %s242
      $region28: #{spectral_conv3d.1} parent=15 // pred_fallthru
        _
      // Predicated region
      $region29: #{spectral_conv3d.1} parent=15 // pred_check
        %p244 = pneg %p130
      $region30: #{spectral_conv3d.1} parent=15 // pred_check_branch
        %246 = sbr.rel (%p244) target = $region32
      $region31: #{spectral_conv3d.1} parent=15 // pred_region
        %p247 = scmp.lt.s32.totalorder %s19, 3
        %s248 = scalar_select %p247, %s19, 3
        %p249 = scmp.lt.s32.totalorder %s20, 0
        %s250 = scalar_select %p249, %s20, 0
        %s251 = smul.addr %s248, 4
        %s252 = sadd.s32 %s250, %s251
        %s253 = smul.addr %s252, 4
        %s254 = scalar_lea.vmem %s3, %s253
      $region32: #{spectral_conv3d.1} parent=15 // pred_fallthru
        _
    $region16: #{spectral_conv3d.1} parent=5 // pred_fallthru
      _
    %p255 = scmp.le.s32.totalorder 1, %s12
    %p256 = scmp.lt.s32.totalorder %s12, 5
    %p257 = pnand %p255, %p256
    %p258 = pneg %p257
    // Predicated region
    $region33: #{spectral_conv3d.1} parent=5 // pred_check
      _
    $region34: #{spectral_conv3d.1} parent=5 // pred_check_branch
      %260 = sbr.rel (%p257) target = $region36
    $region35: #{spectral_conv3d.1} parent=5 // pred_region
      %s261 = ssub.s32 %s12, 1
      %p262 = scmp.lt.s32.totalorder %s21, 3
      %s263 = scalar_select %p262, %s21, 3
      %p264 = scmp.lt.s32.totalorder %s22, 0
      %s265 = scalar_select %p264, %s22, 0
      %s266 = smul.addr %s263, 4
      %s267 = sadd.s32 %s265, %s266
      %s268 = smul.addr %s267, 2
      %s269 = scalar_lea.vmem %s0, %s268
      %p270 = pneg %p52
      %p271 = pneg %p49
      %p272 = scmp.lt.s32.totalorder %s21, 3
      %s273 = scalar_select %p272, %s21, 3
      %p274 = scmp.lt.s32.totalorder %s22, 0
      %s275 = scalar_select %p274, %s22, 0
      %s276 = smul.addr %s273, 4
      %s277 = sadd.s32 %s275, %s276
      %s278 = smul.addr %s277, 2
      %s279 = scalar_lea.vmem %s1, %s278
      %p280 = pneg %p80
      %p281 = pneg %p77
      %p282 = scmp.lt.s32.totalorder %s21, 3
      %s283 = scalar_select %p282, %s21, 3
      %p284 = scmp.lt.s32.totalorder %s22, 0
      %s285 = scalar_select %p284, %s22, 0
      %s286 = smul.addr %s283, 4
      %s287 = sadd.s32 %s285, %s286
      %s288 = smul.addr %s287, 4
      %s289 = scalar_lea.vmem %s2, %s288
      %p290 = pneg %p108
      %p291 = pneg %p105
      %p292 = scmp.lt.s32.totalorder %s21, 3
      %s293 = scalar_select %p292, %s21, 3
      %p294 = scmp.lt.s32.totalorder %s22, 0
      %s295 = scalar_select %p294, %s22, 0
      %s296 = smul.addr %s293, 4
      %s297 = sadd.s32 %s295, %s296
      %s298 = smul.addr %s297, 4
      %s299 = scalar_lea.vmem %s3, %s298
      %p300 = pneg %p136
      %p301 = pneg %p133
      %p302 = pneg %p164
      %p303 = pneg %p161
      %p304 = scmp.lt.s32.totalorder %s21, 3
      %s305 = scalar_select %p304, %s21, 3
      %p306 = scmp.lt.s32.totalorder %s22, 0
      %s307 = scalar_select %p306, %s22, 0
      %s308 = smul.addr %s305, 2
      %s309 = sadd.s32 %s307, %s308
      %s310 = smul.addr %s309, 4
      %s311 = scalar_lea.vmem %s4, %s310
      %p312 = pneg %p192
      %p313 = pneg %p189
      %p314 = scmp.lt.s32.totalorder %s21, 3
      %s315 = scalar_select %p314, %s21, 3
      %p316 = scmp.lt.s32.totalorder %s22, 0
      %s317 = scalar_select %p316, %s22, 0
      %s318 = smul.addr %s315, 2
      %s319 = sadd.s32 %s317, %s318
      %s320 = smul.addr %s319, 4
      %s321 = scalar_lea.vmem %s5, %s320
      %p322 = scmp.lt.s32.totalorder %s21, 3
      %s323 = scalar_select %p322, %s21, 3
      %p324 = scmp.lt.s32.totalorder %s22, 0
      %s325 = scalar_select %p324, %s22, 0
      %s326 = smul.addr %s323, 4
      %s327 = sadd.s32 %s325, %s326
      %s328 = smul.addr %s327, 2
      %s329 = scalar_lea.vmem %s0, %s328
      %p330 = scmp.lt.s32.totalorder %s21, 3
      %s331 = scalar_select %p330, %s21, 3
      %p332 = scmp.lt.s32.totalorder %s22, 0
      %s333 = scalar_select %p332, %s22, 0
      %s334 = smul.addr %s331, 4
      %s335 = sadd.s32 %s333, %s334
      %s336 = smul.addr %s335, 2
      %s337 = scalar_lea.vmem %s1, %s336
      %p338 = scmp.lt.s32.totalorder %s21, 3
      %s339 = scalar_select %p338, %s21, 3
      %p340 = scmp.lt.s32.totalorder %s22, 0
      %s341 = scalar_select %p340, %s22, 0
      %s342 = smul.addr %s339, 4
      %s343 = sadd.s32 %s341, %s342
      %s344 = smul.addr %s343, 4
      %s345 = scalar_lea.vmem %s2, %s344
      %p346 = scmp.lt.s32.totalorder %s21, 3
      %s347 = scalar_select %p346, %s21, 3
      %p348 = scmp.lt.s32.totalorder %s22, 0
      %s349 = scalar_select %p348, %s22, 0
      %s350 = smul.addr %s347, 4
      %s351 = sadd.s32 %s349, %s350
      %s352 = smul.addr %s351, 4
      %s353 = scalar_lea.vmem %s3, %s352
      %p354 = scmp.lt.s32.totalorder %s21, 3
      %s355 = scalar_select %p354, %s21, 3
      %p356 = scmp.lt.s32.totalorder %s22, 0
      %s357 = scalar_select %p356, %s22, 0
      %s358 = smul.addr %s355, 2
      %s359 = sadd.s32 %s357, %s358
      %s360 = smul.addr %s359, 4
      %s361 = scalar_lea.vmem %s4, %s360
      %p362 = scmp.lt.s32.totalorder %s21, 3
      %s363 = scalar_select %p362, %s21, 3
      %p364 = scmp.lt.s32.totalorder %s22, 0
      %s365 = scalar_select %p364, %s22, 0
      %s366 = smul.addr %s363, 2
      %s367 = sadd.s32 %s365, %s366
      %s368 = smul.addr %s367, 4
      %s369 = scalar_lea.vmem %s5, %s368
      %v370 = vld [vmem:[%s329] sm:$0x1]
      %v371 = vld [vmem:[%s337] sm:$0x1]
      %v372 = vld [vmem:[%s345] sm:$0xf]
      %v373 = vld [vmem:[%s353] sm:$0xf]
      %v374 = vlaneseq
      %v375 = vshrl.u32 %v374, 7
      %v376 = vsub.s32 0, %v375
      %v377 = vrot.slane %v370, %v376
      %v378 = vmul.f32 %v377, %v372
      %v379 = vlaneseq
      %v380 = vshrl.u32 %v379, 7
      %v381 = vsub.s32 0, %v380
      %v382 = vrot.slane %v371, %v381
      %v383 = vmul.f32 %v382, %v373
      %v384 = vsub.f32 %v378, %v383
      %v385 = vadd.f32 %v384, 0.0
      %v386 = vmul.f32 %v377, %v373
      %v387 = vmul.f32 %v382, %v372
      %v388 = vadd.f32 %v386, %v387
      %v389 = vadd.f32 %v388, 0.0
      %s390 = scalar_lea.vmem %s329, 2
      %v391 = vld [vmem:[%s390] sm:$0x1]
      %s392 = scalar_lea.vmem %s337, 2
      %v393 = vld [vmem:[%s392] sm:$0x1]
      %s394 = scalar_lea.vmem %s345, 4
      %v395 = vld [vmem:[%s394] sm:$0xf]
      %s396 = scalar_lea.vmem %s353, 4
      %v397 = vld [vmem:[%s396] sm:$0xf]
      %v398 = vlaneseq
      %v399 = vshrl.u32 %v398, 7
      %v400 = vsub.s32 0, %v399
      %v401 = vrot.slane %v391, %v400
      %v402 = vmul.f32 %v401, %v395
      %v403 = vlaneseq
      %v404 = vshrl.u32 %v403, 7
      %v405 = vsub.s32 0, %v404
      %v406 = vrot.slane %v393, %v405
      %v407 = vmul.f32 %v406, %v397
      %v408 = vsub.f32 %v402, %v407
      %v409 = vadd.f32 %v385, %v408
      %v410 = vmul.f32 %v401, %v397
      %v411 = vmul.f32 %v406, %v395
      %v412 = vadd.f32 %v410, %v411
      %v413 = vadd.f32 %v389, %v412
      %s414 = scalar_lea.vmem %s329, 4
      %v415 = vld [vmem:[%s414] sm:$0x1]
      %s416 = scalar_lea.vmem %s337, 4
      %v417 = vld [vmem:[%s416] sm:$0x1]
      %s418 = scalar_lea.vmem %s345, 8
      %v419 = vld [vmem:[%s418] sm:$0xf]
      %s420 = scalar_lea.vmem %s353, 8
      %v421 = vld [vmem:[%s420] sm:$0xf]
      %v422 = vlaneseq
      %v423 = vshrl.u32 %v422, 7
      %v424 = vsub.s32 0, %v423
      %v425 = vrot.slane %v415, %v424
      %v426 = vmul.f32 %v425, %v419
      %v427 = vlaneseq
      %v428 = vshrl.u32 %v427, 7
      %v429 = vsub.s32 0, %v428
      %v430 = vrot.slane %v417, %v429
      %v431 = vmul.f32 %v430, %v421
      %v432 = vsub.f32 %v426, %v431
      %v433 = vadd.f32 %v409, %v432
      %v434 = vmul.f32 %v425, %v421
      %v435 = vmul.f32 %v430, %v419
      %v436 = vadd.f32 %v434, %v435
      %v437 = vadd.f32 %v413, %v436
      %s438 = scalar_lea.vmem %s329, 6
      %v439 = vld [vmem:[%s438] sm:$0x1]
      %s440 = scalar_lea.vmem %s337, 6
      %v441 = vld [vmem:[%s440] sm:$0x1]
      %s442 = scalar_lea.vmem %s345, 12
      %v443 = vld [vmem:[%s442] sm:$0xf]
      %s444 = scalar_lea.vmem %s353, 12
      %v445 = vld [vmem:[%s444] sm:$0xf]
      %v446 = vlaneseq
      %v447 = vshrl.u32 %v446, 7
      %v448 = vsub.s32 0, %v447
      %v449 = vrot.slane %v439, %v448
      %v450 = vmul.f32 %v449, %v443
      %v451 = vlaneseq
      %v452 = vshrl.u32 %v451, 7
      %v453 = vsub.s32 0, %v452
      %v454 = vrot.slane %v441, %v453
      %v455 = vmul.f32 %v454, %v445
      %v456 = vsub.f32 %v450, %v455
      %v457 = vadd.f32 %v433, %v456
      %v458 = vmul.f32 %v449, %v445
      %v459 = vmul.f32 %v454, %v443
      %v460 = vadd.f32 %v458, %v459
      %v461 = vadd.f32 %v437, %v460
      %462 = vst [vmem:[%s361] sm:$0xf] %v457
      %463 = vst [vmem:[%s369] sm:$0xf] %v461
      %v464 = vld [vmem:[%s329 + $0x1] sm:$0x1]
      %v465 = vld [vmem:[%s337 + $0x1] sm:$0x1]
      %v466 = vld [vmem:[%s345] sm:$0xf]
      %v467 = vld [vmem:[%s353] sm:$0xf]
      %v468 = vlaneseq
      %v469 = vshrl.u32 %v468, 7
      %v470 = vsub.s32 0, %v469
      %v471 = vrot.slane %v464, %v470
      %v472 = vmul.f32 %v471, %v466
      %v473 = vlaneseq
      %v474 = vshrl.u32 %v473, 7
      %v475 = vsub.s32 0, %v474
      %v476 = vrot.slane %v465, %v475
      %v477 = vmul.f32 %v476, %v467
      %v478 = vsub.f32 %v472, %v477
      %v479 = vadd.f32 %v478, 0.0
      %v480 = vmul.f32 %v471, %v467
      %v481 = vmul.f32 %v476, %v466
      %v482 = vadd.f32 %v480, %v481
      %v483 = vadd.f32 %v482, 0.0
      %v484 = vld [vmem:[%s390 + $0x1] sm:$0x1]
      %v485 = vld [vmem:[%s392 + $0x1] sm:$0x1]
      %v486 = vld [vmem:[%s394] sm:$0xf]
      %v487 = vld [vmem:[%s396] sm:$0xf]
      %v488 = vlaneseq
      %v489 = vshrl.u32 %v488, 7
      %v490 = vsub.s32 0, %v489
      %v491 = vrot.slane %v484, %v490
      %v492 = vmul.f32 %v491, %v486
      %v493 = vlaneseq
      %v494 = vshrl.u32 %v493, 7
      %v495 = vsub.s32 0, %v494
      %v496 = vrot.slane %v485, %v495
      %v497 = vmul.f32 %v496, %v487
      %v498 = vsub.f32 %v492, %v497
      %v499 = vadd.f32 %v479, %v498
      %v500 = vmul.f32 %v491, %v487
      %v501 = vmul.f32 %v496, %v486
      %v502 = vadd.f32 %v500, %v501
      %v503 = vadd.f32 %v483, %v502
      %v504 = vld [vmem:[%s414 + $0x1] sm:$0x1]
      %v505 = vld [vmem:[%s416 + $0x1] sm:$0x1]
      %v506 = vld [vmem:[%s418] sm:$0xf]
      %v507 = vld [vmem:[%s420] sm:$0xf]
      %v508 = vlaneseq
      %v509 = vshrl.u32 %v508, 7
      %v510 = vsub.s32 0, %v509
      %v511 = vrot.slane %v504, %v510
      %v512 = vmul.f32 %v511, %v506
      %v513 = vlaneseq
      %v514 = vshrl.u32 %v513, 7
      %v515 = vsub.s32 0, %v514
      %v516 = vrot.slane %v505, %v515
      %v517 = vmul.f32 %v516, %v507
      %v518 = vsub.f32 %v512, %v517
      %v519 = vadd.f32 %v499, %v518
      %v520 = vmul.f32 %v511, %v507
      %v521 = vmul.f32 %v516, %v506
      %v522 = vadd.f32 %v520, %v521
      %v523 = vadd.f32 %v503, %v522
      %v524 = vld [vmem:[%s438 + $0x1] sm:$0x1]
      %v525 = vld [vmem:[%s440 + $0x1] sm:$0x1]
      %v526 = vld [vmem:[%s442] sm:$0xf]
      %v527 = vld [vmem:[%s444] sm:$0xf]
      %v528 = vlaneseq
      %v529 = vshrl.u32 %v528, 7
      %v530 = vsub.s32 0, %v529
      %v531 = vrot.slane %v524, %v530
      %v532 = vmul.f32 %v531, %v526
      %v533 = vlaneseq
      %v534 = vshrl.u32 %v533, 7
      %v535 = vsub.s32 0, %v534
      %v536 = vrot.slane %v525, %v535
      %v537 = vmul.f32 %v536, %v527
      %v538 = vsub.f32 %v532, %v537
      %v539 = vadd.f32 %v519, %v538
      %v540 = vmul.f32 %v531, %v527
      %v541 = vmul.f32 %v536, %v526
      %v542 = vadd.f32 %v540, %v541
      %v543 = vadd.f32 %v523, %v542
      %s544 = scalar_lea.vmem %s361, 4
      %545 = vst [vmem:[%s544] sm:$0xf] %v539
      %s546 = scalar_lea.vmem %s369, 4
      %547 = vst [vmem:[%s546] sm:$0xf] %v543
      %p548 = scmp.lt.s32.totalorder %s21, 3
      %s549 = scalar_select %p548, %s21, 3
      %p550 = scmp.lt.s32.totalorder %s22, 0
      %s551 = scalar_select %p550, %s22, 0
      %s552 = smul.addr %s549, 2
      %s553 = sadd.s32 %s551, %s552
      %s554 = smul.addr %s553, 4
      %s555 = scalar_lea.vmem %s4, %s554
      %p556 = scmp.lt.s32.totalorder %s21, 3
      %s557 = scalar_select %p556, %s21, 3
      %p558 = scmp.lt.s32.totalorder %s22, 0
      %s559 = scalar_select %p558, %s22, 0
      %s560 = smul.addr %s557, 2
      %s561 = sadd.s32 %s559, %s560
      %s562 = smul.addr %s561, 4
      %s563 = scalar_lea.vmem %s5, %s562
      // Predicated region
      $region37: #{spectral_conv3d.1} parent=35 // pred_check
        %p564 = pneg %p161
      $region38: #{spectral_conv3d.1} parent=35 // pred_check_branch
        %566 = sbr.rel (%p564) target = $region40
      $region39: #{spectral_conv3d.1} parent=35 // pred_region
        _
      $region40: #{spectral_conv3d.1} parent=35 // pred_fallthru
        _
      // Predicated region
      $region41: #{spectral_conv3d.1} parent=35 // pred_check
        %p567 = pneg %p189
      $region42: #{spectral_conv3d.1} parent=35 // pred_check_branch
        %569 = sbr.rel (%p567) target = $region44
      $region43: #{spectral_conv3d.1} parent=35 // pred_region
        _
      $region44: #{spectral_conv3d.1} parent=35 // pred_fallthru
        _
    $region36: #{spectral_conv3d.1} parent=5 // pred_fallthru
      _
    %p570 = scmp.le.s32.totalorder 2, %s12
    // Predicated region
    $region45: #{spectral_conv3d.1} parent=5 // pred_check
      %p571 = pneg %p570
    $region46: #{spectral_conv3d.1} parent=5 // pred_check_branch
      %573 = sbr.rel (%p571) target = $region48
    $region47: #{spectral_conv3d.1} parent=5 // pred_region
      %s574 = ssub.s32 %s12, 2
      // Predicated region
      $region49: #{spectral_conv3d.1} parent=47 // pred_check
        %p575 = pneg %p167
      $region50: #{spectral_conv3d.1} parent=47 // pred_check_branch
        %577 = sbr.rel (%p575) target = $region52
      $region51: #{spectral_conv3d.1} parent=47 // pred_region
        %p578 = scmp.lt.s32.totalorder %s23, 3
        %s579 = scalar_select %p578, %s23, 3
        %p580 = scmp.lt.s32.totalorder %s24, 0
        %s581 = scalar_select %p580, %s24, 0
        %s582 = smul.addr %s579, 2
        %s583 = sadd.s32 %s581, %s582
        %s584 = smul.addr %s583, 4
        %s585 = scalar_lea.vmem %s4, %s584
      $region52: #{spectral_conv3d.1} parent=47 // pred_fallthru
        _
      // Predicated region
      $region53: #{spectral_conv3d.1} parent=47 // pred_check
        %p586 = pneg %p195
      $region54: #{spectral_conv3d.1} parent=47 // pred_check_branch
        %588 = sbr.rel (%p586) target = $region56
      $region55: #{spectral_conv3d.1} parent=47 // pred_region
        %p589 = scmp.lt.s32.totalorder %s23, 3
        %s590 = scalar_select %p589, %s23, 3
        %p591 = scmp.lt.s32.totalorder %s24, 0
        %s592 = scalar_select %p591, %s24, 0
        %s593 = smul.addr %s590, 2
        %s594 = sadd.s32 %s592, %s593
        %s595 = smul.addr %s594, 4
        %s596 = scalar_lea.vmem %s5, %s595
      $region56: #{spectral_conv3d.1} parent=47 // pred_fallthru
        _
    $region48: #{spectral_conv3d.1} parent=5 // pred_fallthru
      _
  $region6: #{spectral_conv3d.1} parent=0 // loop_footer
    %s16 = sadd.s32 1, %s12
  $region7: #{spectral_conv3d.1} parent=0 // loop_footer_branch
    %11 = sbr.rel target = $region3
  $region8: #{spectral_conv3d.1} parent=0 // loop_exit
    _

// kernel: reverse.1
$region0: #{reverse.1}
  #allocation0 [shape = 's32[1]{0}', space=sflag, size = 0x4, scoped, tag = 'scoped memory for reverse.1']
  %s0 = inlined_call_operand.vmem [shape: f32[2,4,16,16,7], index: 0, kind: input, shape index: {}]
  %s1 = inlined_call_operand.vmem [shape: f32[2,4,16,16,7], index: 1, kind: output, shape index: {}]
  %s2 = scalar_lea.vmem %s0, 96
  %v3 = vld [vmem:[%s2] sm:$0xff]
  %4 = vst [vmem:[%s1] sm:$0xff] %v3
  %s5 = scalar_lea.vmem %s0, 544
  %v6 = vld [vmem:[%s5] sm:$0xff]
  %s7 = scalar_lea.vmem %s1, 448
  %8 = vst [vmem:[%s7] sm:$0xff] %v6
  %s9 = scalar_lea.vmem %s0, 208
  %v10 = vld [vmem:[%s9] sm:$0xff]
  %s11 = scalar_lea.vmem %s1, 112
  %12 = vst [vmem:[%s11] sm:$0xff] %v10
  %s13 = scalar_lea.vmem %s0, 656
  %v14 = vld [vmem:[%s13] sm:$0xff]
  %s15 = scalar_lea.vmem %s1, 560
  %16 = vst [vmem:[%s15] sm:$0xff] %v14
  %s17 = scalar_lea.vmem %s0, 320
  %v18 = vld [vmem:[%s17] sm:$0xff]
  %s19 = scalar_lea.vmem %s1, 224
  %20 = vst [vmem:[%s19] sm:$0xff] %v18
  %s21 = scalar_lea.vmem %s0, 768
  %v22 = vld [vmem:[%s21] sm:$0xff]
  %s23 = scalar_lea.vmem %s1, 672
  %24 = vst [vmem:[%s23] sm:$0xff] %v22
  %s25 = scalar_lea.vmem %s0, 432
  %v26 = vld [vmem:[%s25] sm:$0xff]
  %s27 = scalar_lea.vmem %s1, 336
  %28 = vst [vmem:[%s27] sm:$0xff] %v26
  %s29 = scalar_lea.vmem %s0, 880
  %v30 = vld [vmem:[%s29] sm:$0xff]
  %s31 = scalar_lea.vmem %s1, 784
  %32 = vst [vmem:[%s31] sm:$0xff] %v30
  %s33 = scalar_lea.vmem %s0, 80
  %v34 = vld [vmem:[%s33] sm:$0xff]
  %s35 = scalar_lea.vmem %s1, 16
  %36 = vst [vmem:[%s35] sm:$0xff] %v34
  %s37 = scalar_lea.vmem %s0, 528
  %v38 = vld [vmem:[%s37] sm:$0xff]
  %s39 = scalar_lea.vmem %s1, 464
  %40 = vst [vmem:[%s39] sm:$0xff] %v38
  %s41 = scalar_lea.vmem %s0, 192
  %v42 = vld [vmem:[%s41] sm:$0xff]
  %s43 = scalar_lea.vmem %s1, 128
  %44 = vst [vmem:[%s43] sm:$0xff] %v42
  %s45 = scalar_lea.vmem %s0, 640
  %v46 = vld [vmem:[%s45] sm:$0xff]
  %s47 = scalar_lea.vmem %s1, 576
  %48 = vst [vmem:[%s47] sm:$0xff] %v46
  %s49 = scalar_lea.vmem %s0, 304
  %v50 = vld [vmem:[%s49] sm:$0xff]
  %s51 = scalar_lea.vmem %s1, 240
  %52 = vst [vmem:[%s51] sm:$0xff] %v50
  %s53 = scalar_lea.vmem %s0, 752
  %v54 = vld [vmem:[%s53] sm:$0xff]
  %s55 = scalar_lea.vmem %s1, 688
  %56 = vst [vmem:[%s55] sm:$0xff] %v54
  %s57 = scalar_lea.vmem %s0, 416
  %v58 = vld [vmem:[%s57] sm:$0xff]
  %s59 = scalar_lea.vmem %s1, 352
  %60 = vst [vmem:[%s59] sm:$0xff] %v58
  %s61 = scalar_lea.vmem %s0, 864
  %v62 = vld [vmem:[%s61] sm:$0xff]
  %s63 = scalar_lea.vmem %s1, 800
  %64 = vst [vmem:[%s63] sm:$0xff] %v62
  %s65 = scalar_lea.vmem %s0, 64
  %v66 = vld [vmem:[%s65] sm:$0xff]
  %s67 = scalar_lea.vmem %s1, 32
  %68 = vst [vmem:[%s67] sm:$0xff] %v66
  %s69 = scalar_lea.vmem %s0, 512
  %v70 = vld [vmem:[%s69] sm:$0xff]
  %s71 = scalar_lea.vmem %s1, 480
  %72 = vst [vmem:[%s71] sm:$0xff] %v70
  %s73 = scalar_lea.vmem %s0, 176
  %v74 = vld [vmem:[%s73] sm:$0xff]
  %s75 = scalar_lea.vmem %s1, 144
  %76 = vst [vmem:[%s75] sm:$0xff] %v74
  %s77 = scalar_lea.vmem %s0, 624
  %v78 = vld [vmem:[%s77] sm:$0xff]
  %s79 = scalar_lea.vmem %s1, 592
  %80 = vst [vmem:[%s79] sm:$0xff] %v78
  %s81 = scalar_lea.vmem %s0, 288
  %v82 = vld [vmem:[%s81] sm:$0xff]
  %s83 = scalar_lea.vmem %s1, 256
  %84 = vst [vmem:[%s83] sm:$0xff] %v82
  %s85 = scalar_lea.vmem %s0, 736
  %v86 = vld [vmem:[%s85] sm:$0xff]
  %s87 = scalar_lea.vmem %s1, 704
  %88 = vst [vmem:[%s87] sm:$0xff] %v86
  %s89 = scalar_lea.vmem %s0, 400
  %v90 = vld [vmem:[%s89] sm:$0xff]
  %s91 = scalar_lea.vmem %s1, 368
  %92 = vst [vmem:[%s91] sm:$0xff] %v90
  %s93 = scalar_lea.vmem %s0, 848
  %v94 = vld [vmem:[%s93] sm:$0xff]
  %s95 = scalar_lea.vmem %s1, 816
  %96 = vst [vmem:[%s95] sm:$0xff] %v94
  %s97 = scalar_lea.vmem %s0, 48
  %v98 = vld [vmem:[%s97] sm:$0xff]
  %s99 = scalar_lea.vmem %s1, 48
  %100 = vst [vmem:[%s99] sm:$0xff] %v98
  %s101 = scalar_lea.vmem %s0, 496
  %v102 = vld [vmem:[%s101] sm:$0xff]
  %s103 = scalar_lea.vmem %s1, 496
  %104 = vst [vmem:[%s103] sm:$0xff] %v102
  %s105 = scalar_lea.vmem %s0, 160
  %v106 = vld [vmem:[%s105] sm:$0xff]
  %s107 = scalar_lea.vmem %s1, 160
  %108 = vst [vmem:[%s107] sm:$0xff] %v106
  %s109 = scalar_lea.vmem %s0, 608
  %v110 = vld [vmem:[%s109] sm:$0xff]
  %s111 = scalar_lea.vmem %s1, 608
  %112 = vst [vmem:[%s111] sm:$0xff] %v110
  %s113 = scalar_lea.vmem %s0, 272
  %v114 = vld [vmem:[%s113] sm:$0xff]
  %s115 = scalar_lea.vmem %s1, 272
  %116 = vst [vmem:[%s115] sm:$0xff] %v114
  %s117 = scalar_lea.vmem %s0, 720
  %v118 = vld [vmem:[%s117] sm:$0xff]
  %s119 = scalar_lea.vmem %s1, 720
  %120 = vst [vmem:[%s119] sm:$0xff] %v118
  %s121 = scalar_lea.vmem %s0, 384
  %v122 = vld [vmem:[%s121] sm:$0xff]
  %s123 = scalar_lea.vmem %s1, 384
  %124 = vst [vmem:[%s123] sm:$0xff] %v122
  %s125 = scalar_lea.vmem %s0, 832
  %v126 = vld [vmem:[%s125] sm:$0xff]
  %s127 = scalar_lea.vmem %s1, 832
  %128 = vst [vmem:[%s127] sm:$0xff] %v126
  %s129 = scalar_lea.vmem %s0, 32
  %v130 = vld [vmem:[%s129] sm:$0xff]
  %s131 = scalar_lea.vmem %s1, 64
  %132 = vst [vmem:[%s131] sm:$0xff] %v130
  %s133 = scalar_lea.vmem %s0, 480
  %v134 = vld [vmem:[%s133] sm:$0xff]
  %s135 = scalar_lea.vmem %s1, 512
  %136 = vst [vmem:[%s135] sm:$0xff] %v134
  %s137 = scalar_lea.vmem %s0, 144
  %v138 = vld [vmem:[%s137] sm:$0xff]
  %s139 = scalar_lea.vmem %s1, 176
  %140 = vst [vmem:[%s139] sm:$0xff] %v138
  %s141 = scalar_lea.vmem %s0, 592
  %v142 = vld [vmem:[%s141] sm:$0xff]
  %s143 = scalar_lea.vmem %s1, 624
  %144 = vst [vmem:[%s143] sm:$0xff] %v142
  %s145 = scalar_lea.vmem %s0, 256
  %v146 = vld [vmem:[%s145] sm:$0xff]
  %s147 = scalar_lea.vmem %s1, 288
  %148 = vst [vmem:[%s147] sm:$0xff] %v146
  %s149 = scalar_lea.vmem %s0, 704
  %v150 = vld [vmem:[%s149] sm:$0xff]
  %s151 = scalar_lea.vmem %s1, 736
  %152 = vst [vmem:[%s151] sm:$0xff] %v150
  %s153 = scalar_lea.vmem %s0, 368
  %v154 = vld [vmem:[%s153] sm:$0xff]
  %s155 = scalar_lea.vmem %s1, 400
  %156 = vst [vmem:[%s155] sm:$0xff] %v154
  %s157 = scalar_lea.vmem %s0, 816
  %v158 = vld [vmem:[%s157] sm:$0xff]
  %s159 = scalar_lea.vmem %s1, 848
  %160 = vst [vmem:[%s159] sm:$0xff] %v158
  %s161 = scalar_lea.vmem %s0, 16
  %v162 = vld [vmem:[%s161] sm:$0xff]
  %s163 = scalar_lea.vmem %s1, 80
  %164 = vst [vmem:[%s163] sm:$0xff] %v162
  %s165 = scalar_lea.vmem %s0, 464
  %v166 = vld [vmem:[%s165] sm:$0xff]
  %s167 = scalar_lea.vmem %s1, 528
  %168 = vst [vmem:[%s167] sm:$0xff] %v166
  %s169 = scalar_lea.vmem %s0, 128
  %v170 = vld [vmem:[%s169] sm:$0xff]
  %s171 = scalar_lea.vmem %s1, 192
  %172 = vst [vmem:[%s171] sm:$0xff] %v170
  %s173 = scalar_lea.vmem %s0, 576
  %v174 = vld [vmem:[%s173] sm:$0xff]
  %s175 = scalar_lea.vmem %s1, 640
  %176 = vst [vmem:[%s175] sm:$0xff] %v174
  %s177 = scalar_lea.vmem %s0, 240
  %v178 = vld [vmem:[%s177] sm:$0xff]
  %s179 = scalar_lea.vmem %s1, 304
  %180 = vst [vmem:[%s179] sm:$0xff] %v178
  %s181 = scalar_lea.vmem %s0, 688
  %v182 = vld [vmem:[%s181] sm:$0xff]
  %s183 = scalar_lea.vmem %s1, 752
  %184 = vst [vmem:[%s183] sm:$0xff] %v182
  %s185 = scalar_lea.vmem %s0, 352
  %v186 = vld [vmem:[%s185] sm:$0xff]
  %s187 = scalar_lea.vmem %s1, 416
  %188 = vst [vmem:[%s187] sm:$0xff] %v186
  %s189 = scalar_lea.vmem %s0, 800
  %v190 = vld [vmem:[%s189] sm:$0xff]
  %s191 = scalar_lea.vmem %s1, 864
  %192 = vst [vmem:[%s191] sm:$0xff] %v190
  %v193 = vld [vmem:[%s0] sm:$0xff]
  %s194 = scalar_lea.vmem %s1, 96
  %195 = vst [vmem:[%s194] sm:$0xff] %v193
  %s196 = scalar_lea.vmem %s0, 448
  %v197 = vld [vmem:[%s196] sm:$0xff]
  %s198 = scalar_lea.vmem %s1, 544
  %199 = vst [vmem:[%s198] sm:$0xff] %v197
  %s200 = scalar_lea.vmem %s0, 112
  %v201 = vld [vmem:[%s200] sm:$0xff]
  %s202 = scalar_lea.vmem %s1, 208
  %203 = vst [vmem:[%s202] sm:$0xff] %v201
  %s204 = scalar_lea.vmem %s0, 560
  %v205 = vld [vmem:[%s204] sm:$0xff]
  %s206 = scalar_lea.vmem %s1, 656
  %207 = vst [vmem:[%s206] sm:$0xff] %v205
  %s208 = scalar_lea.vmem %s0, 224
  %v209 = vld [vmem:[%s208] sm:$0xff]
  %s210 = scalar_lea.vmem %s1, 320
  %211 = vst [vmem:[%s210] sm:$0xff] %v209
  %s212 = scalar_lea.vmem %s0, 672
  %v213 = vld [vmem:[%s212] sm:$0xff]
  %s214 = scalar_lea.vmem %s1, 768
  %215 = vst [vmem:[%s214] sm:$0xff] %v213
  %s216 = scalar_lea.vmem %s0, 336
  %v217 = vld [vmem:[%s216] sm:$0xff]
  %s218 = scalar_lea.vmem %s1, 432
  %219 = vst [vmem:[%s218] sm:$0xff] %v217
  %s220 = scalar_lea.vmem %s0, 784
  %v221 = vld [vmem:[%s220] sm:$0xff]
  %s222 = scalar_lea.vmem %s1, 880
  %223 = vst [vmem:[%s222] sm:$0xff] %v221
  %s224 = scalar_lea.vmem %s0, 104
  %v225 = vld [vmem:[%s224] sm:$0xff]
  %s226 = scalar_lea.vmem %s1, 8
  %227 = vst [vmem:[%s226] sm:$0xff] %v225
  %s228 = scalar_lea.vmem %s0, 552
  %v229 = vld [vmem:[%s228] sm:$0xff]
  %s230 = scalar_lea.vmem %s1, 456
  %231 = vst [vmem:[%s230] sm:$0xff] %v229
  %s232 = scalar_lea.vmem %s0, 216
  %v233 = vld [vmem:[%s232] sm:$0xff]
  %s234 = scalar_lea.vmem %s1, 120
  %235 = vst [vmem:[%s234] sm:$0xff] %v233
  %s236 = scalar_lea.vmem %s0, 664
  %v237 = vld [vmem:[%s236] sm:$0xff]
  %s238 = scalar_lea.vmem %s1, 568
  %239 = vst [vmem:[%s238] sm:$0xff] %v237
  %s240 = scalar_lea.vmem %s0, 328
  %v241 = vld [vmem:[%s240] sm:$0xff]
  %s242 = scalar_lea.vmem %s1, 232
  %243 = vst [vmem:[%s242] sm:$0xff] %v241
  %s244 = scalar_lea.vmem %s0, 776
  %v245 = vld [vmem:[%s244] sm:$0xff]
  %s246 = scalar_lea.vmem %s1, 680
  %247 = vst [vmem:[%s246] sm:$0xff] %v245
  %s248 = scalar_lea.vmem %s0, 440
  %v249 = vld [vmem:[%s248] sm:$0xff]
  %s250 = scalar_lea.vmem %s1, 344
  %251 = vst [vmem:[%s250] sm:$0xff] %v249
  %s252 = scalar_lea.vmem %s0, 888
  %v253 = vld [vmem:[%s252] sm:$0xff]
  %s254 = scalar_lea.vmem %s1, 792
  %255 = vst [vmem:[%s254] sm:$0xff] %v253
  %s256 = scalar_lea.vmem %s0, 88
  %v257 = vld [vmem:[%s256] sm:$0xff]
  %s258 = scalar_lea.vmem %s1, 24
  %259 = vst [vmem:[%s258] sm:$0xff] %v257
  %s260 = scalar_lea.vmem %s0, 536
  %v261 = vld [vmem:[%s260] sm:$0xff]
  %s262 = scalar_lea.vmem %s1, 472
  %263 = vst [vmem:[%s262] sm:$0xff] %v261
  %s264 = scalar_lea.vmem %s0, 200
  %v265 = vld [vmem:[%s264] sm:$0xff]
  %s266 = scalar_lea.vmem %s1, 136
  %267 = vst [vmem:[%s266] sm:$0xff] %v265
  %s268 = scalar_lea.vmem %s0, 648
  %v269 = vld [vmem:[%s268] sm:$0xff]
  %s270 = scalar_lea.vmem %s1, 584
  %271 = vst [vmem:[%s270] sm:$0xff] %v269
  %s272 = scalar_lea.vmem %s0, 312
  %v273 = vld [vmem:[%s272] sm:$0xff]
  %s274 = scalar_lea.vmem %s1, 248
  %275 = vst [vmem:[%s274] sm:$0xff] %v273
  %s276 = scalar_lea.vmem %s0, 760
  %v277 = vld [vmem:[%s276] sm:$0xff]
  %s278 = scalar_lea.vmem %s1, 696
  %279 = vst [vmem:[%s278] sm:$0xff] %v277
  %s280 = scalar_lea.vmem %s0, 424
  %v281 = vld [vmem:[%s280] sm:$0xff]
  %s282 = scalar_lea.vmem %s1, 360
  %283 = vst [vmem:[%s282] sm:$0xff] %v281
  %s284 = scalar_lea.vmem %s0, 872
  %v285 = vld [vmem:[%s284] sm:$0xff]
  %s286 = scalar_lea.vmem %s1, 808
  %287 = vst [vmem:[%s286] sm:$0xff] %v285
  %s288 = scalar_lea.vmem %s0, 72
  %v289 = vld [vmem:[%s288] sm:$0xff]
  %s290 = scalar_lea.vmem %s1, 40
  %291 = vst [vmem:[%s290] sm:$0xff] %v289
  %s292 = scalar_lea.vmem %s0, 520
  %v293 = vld [vmem:[%s292] sm:$0xff]
  %s294 = scalar_lea.vmem %s1, 488
  %295 = vst [vmem:[%s294] sm:$0xff] %v293
  %s296 = scalar_lea.vmem %s0, 184
  %v297 = vld [vmem:[%s296] sm:$0xff]
  %s298 = scalar_lea.vmem %s1, 152
  %299 = vst [vmem:[%s298] sm:$0xff] %v297
  %s300 = scalar_lea.vmem %s0, 632
  %v301 = vld [vmem:[%s300] sm:$0xff]
  %s302 = scalar_lea.vmem %s1, 600
  %303 = vst [vmem:[%s302] sm:$0xff] %v301
  %s304 = scalar_lea.vmem %s0, 296
  %v305 = vld [vmem:[%s304] sm:$0xff]
  %s306 = scalar_lea.vmem %s1, 264
  %307 = vst [vmem:[%s306] sm:$0xff] %v305
  %s308 = scalar_lea.vmem %s0, 744
  %v309 = vld [vmem:[%s308] sm:$0xff]
  %s310 = scalar_lea.vmem %s1, 712
  %311 = vst [vmem:[%s310] sm:$0xff] %v309
  %s312 = scalar_lea.vmem %s0, 408
  %v313 = vld [vmem:[%s312] sm:$0xff]
  %s314 = scalar_lea.vmem %s1, 376
  %315 = vst [vmem:[%s314] sm:$0xff] %v313
  %s316 = scalar_lea.vmem %s0, 856
  %v317 = vld [vmem:[%s316] sm:$0xff]
  %s318 = scalar_lea.vmem %s1, 824
  %319 = vst [vmem:[%s318] sm:$0xff] %v317
  %s320 = scalar_lea.vmem %s0, 56
  %v321 = vld [vmem:[%s320] sm:$0xff]
  %s322 = scalar_lea.vmem %s1, 56
  %323 = vst [vmem:[%s322] sm:$0xff] %v321
  %s324 = scalar_lea.vmem %s0, 504
  %v325 = vld [vmem:[%s324] sm:$0xff]
  %s326 = scalar_lea.vmem %s1, 504
  %327 = vst [vmem:[%s326] sm:$0xff] %v325
  %s328 = scalar_lea.vmem %s0, 168
  %v329 = vld [vmem:[%s328] sm:$0xff]
  %s330 = scalar_lea.vmem %s1, 168
  %331 = vst [vmem:[%s330] sm:$0xff] %v329
  %s332 = scalar_lea.vmem %s0, 616
  %v333 = vld [vmem:[%s332] sm:$0xff]
  %s334 = scalar_lea.vmem %s1, 616
  %335 = vst [vmem:[%s334] sm:$0xff] %v333
  %s336 = scalar_lea.vmem %s0, 280
  %v337 = vld [vmem:[%s336] sm:$0xff]
  %s338 = scalar_lea.vmem %s1, 280
  %339 = vst [vmem:[%s338] sm:$0xff] %v337
  %s340 = scalar_lea.vmem %s0, 728
  %v341 = vld [vmem:[%s340] sm:$0xff]
  %s342 = scalar_lea.vmem %s1, 728
  %343 = vst [vmem:[%s342] sm:$0xff] %v341
  %s344 = scalar_lea.vmem %s0, 392
  %v345 = vld [vmem:[%s344] sm:$0xff]
  %s346 = scalar_lea.vmem %s1, 392
  %347 = vst [vmem:[%s346] sm:$0xff] %v345
  %s348 = scalar_lea.vmem %s0, 840
  %v349 = vld [vmem:[%s348] sm:$0xff]
  %s350 = scalar_lea.vmem %s1, 840
  %351 = vst [vmem:[%s350] sm:$0xff] %v349
  %s352 = scalar_lea.vmem %s0, 40
  %v353 = vld [vmem:[%s352] sm:$0xff]
  %s354 = scalar_lea.vmem %s1, 72
  %355 = vst [vmem:[%s354] sm:$0xff] %v353
  %s356 = scalar_lea.vmem %s0, 488
  %v357 = vld [vmem:[%s356] sm:$0xff]
  %s358 = scalar_lea.vmem %s1, 520
  %359 = vst [vmem:[%s358] sm:$0xff] %v357
  %s360 = scalar_lea.vmem %s0, 152
  %v361 = vld [vmem:[%s360] sm:$0xff]
  %s362 = scalar_lea.vmem %s1, 184
  %363 = vst [vmem:[%s362] sm:$0xff] %v361
  %s364 = scalar_lea.vmem %s0, 600
  %v365 = vld [vmem:[%s364] sm:$0xff]
  %s366 = scalar_lea.vmem %s1, 632
  %367 = vst [vmem:[%s366] sm:$0xff] %v365
  %s368 = scalar_lea.vmem %s0, 264
  %v369 = vld [vmem:[%s368] sm:$0xff]
  %s370 = scalar_lea.vmem %s1, 296
  %371 = vst [vmem:[%s370] sm:$0xff] %v369
  %s372 = scalar_lea.vmem %s0, 712
  %v373 = vld [vmem:[%s372] sm:$0xff]
  %s374 = scalar_lea.vmem %s1, 744
  %375 = vst [vmem:[%s374] sm:$0xff] %v373
  %s376 = scalar_lea.vmem %s0, 376
  %v377 = vld [vmem:[%s376] sm:$0xff]
  %s378 = scalar_lea.vmem %s1, 408
  %379 = vst [vmem:[%s378] sm:$0xff] %v377
  %s380 = scalar_lea.vmem %s0, 824
  %v381 = vld [vmem:[%s380] sm:$0xff]
  %s382 = scalar_lea.vmem %s1, 856
  %383 = vst [vmem:[%s382] sm:$0xff] %v381
  %s384 = scalar_lea.vmem %s0, 24
  %v385 = vld [vmem:[%s384] sm:$0xff]
  %s386 = scalar_lea.vmem %s1, 88
  %387 = vst [vmem:[%s386] sm:$0xff] %v385
  %s388 = scalar_lea.vmem %s0, 472
  %v389 = vld [vmem:[%s388] sm:$0xff]
  %s390 = scalar_lea.vmem %s1, 536
  %391 = vst [vmem:[%s390] sm:$0xff] %v389
  %s392 = scalar_lea.vmem %s0, 136
  %v393 = vld [vmem:[%s392] sm:$0xff]
  %s394 = scalar_lea.vmem %s1, 200
  %395 = vst [vmem:[%s394] sm:$0xff] %v393
  %s396 = scalar_lea.vmem %s0, 584
  %v397 = vld [vmem:[%s396] sm:$0xff]
  %s398 = scalar_lea.vmem %s1, 648
  %399 = vst [vmem:[%s398] sm:$0xff] %v397
  %s400 = scalar_lea.vmem %s0, 248
  %v401 = vld [vmem:[%s400] sm:$0xff]
  %s402 = scalar_lea.vmem %s1, 312
  %403 = vst [vmem:[%s402] sm:$0xff] %v401
  %s404 = scalar_lea.vmem %s0, 696
  %v405 = vld [vmem:[%s404] sm:$0xff]
  %s406 = scalar_lea.vmem %s1, 760
  %407 = vst [vmem:[%s406] sm:$0xff] %v405
  %s408 = scalar_lea.vmem %s0, 360
  %v409 = vld [vmem:[%s408] sm:$0xff]
  %s410 = scalar_lea.vmem %s1, 424
  %411 = vst [vmem:[%s410] sm:$0xff] %v409
  %s412 = scalar_lea.vmem %s0, 808
  %v413 = vld [vmem:[%s412] sm:$0xff]
  %s414 = scalar_lea.vmem %s1, 872
  %415 = vst [vmem:[%s414] sm:$0xff] %v413
  %s416 = scalar_lea.vmem %s0, 8
  %v417 = vld [vmem:[%s416] sm:$0xff]
  %s418 = scalar_lea.vmem %s1, 104
  %419 = vst [vmem:[%s418] sm:$0xff] %v417
  %s420 = scalar_lea.vmem %s0, 456
  %v421 = vld [vmem:[%s420] sm:$0xff]
  %s422 = scalar_lea.vmem %s1, 552
  %423 = vst [vmem:[%s422] sm:$0xff] %v421
  %s424 = scalar_lea.vmem %s0, 120
  %v425 = vld [vmem:[%s424] sm:$0xff]
  %s426 = scalar_lea.vmem %s1, 216
  %427 = vst [vmem:[%s426] sm:$0xff] %v425
  %s428 = scalar_lea.vmem %s0, 568
  %v429 = vld [vmem:[%s428] sm:$0xff]
  %s430 = scalar_lea.vmem %s1, 664
  %431 = vst [vmem:[%s430] sm:$0xff] %v429
  %s432 = scalar_lea.vmem %s0, 232
  %v433 = vld [vmem:[%s432] sm:$0xff]
  %s434 = scalar_lea.vmem %s1, 328
  %435 = vst [vmem:[%s434] sm:$0xff] %v433
  %s436 = scalar_lea.vmem %s0, 680
  %v437 = vld [vmem:[%s436] sm:$0xff]
  %s438 = scalar_lea.vmem %s1, 776
  %439 = vst [vmem:[%s438] sm:$0xff] %v437
  %s440 = scalar_lea.vmem %s0, 344
  %v441 = vld [vmem:[%s440] sm:$0xff]
  %s442 = scalar_lea.vmem %s1, 440
  %443 = vst [vmem:[%s442] sm:$0xff] %v441
  %s444 = scalar_lea.vmem %s0, 792
  %v445 = vld [vmem:[%s444] sm:$0xff]
  %s446 = scalar_lea.vmem %s1, 888
  %447 = vst [vmem:[%s446] sm:$0xff] %v445

</llo_original>
